<compile_context>
chip_gen: v7x
topology: tpu7x:2x2x1
jax: 0.10.0
libtpu: 0.0.40
codegen_flags: <defaults>
</compile_context>

<pallas_src>
import jax
import jax.numpy as jnp
from jax.experimental import pallas as pl
from jax.experimental.pallas import tpu as pltpu

LATENT_DIM = 2
IN_DIM = 784
HID = 200


def _vae_kernel(
    x_ref, zp_ref,
    w1_ref, b1_ref,            # input -> hidden1           (bf16 W, f32 b)
    w2_ref, b2_ref,            # hidden1 -> hidden2         (bf16 W, f32 b)
    wms_ref, bms_ref,          # hidden2 -> [mu | logsig]   (bf16 W, f32 b)
    w3_ref, b3_ref,            # z -> hidden3               (f32, K=2 -> VPU)
    w4_ref, b4_ref,            # hidden3 -> hidden4         (bf16 W, f32 b)
    w5_ref, b5_ref,            # hidden4 -> output          (bf16 W, f32 b)
    y_ref, ms_ref,
):
    x = x_ref[...]                                       # (TB, 784) bf16

    # ---- encoder Q(x) ----
    h1 = jnp.dot(x, w1_ref[...], preferred_element_type=jnp.float32) + b1_ref[...]
    h1 = jnp.maximum(h1, 0.0)                            # (TB, 200) f32
    h2 = jnp.dot(h1.astype(jnp.bfloat16), w2_ref[...],
                 preferred_element_type=jnp.float32) + b2_ref[...]
    h2 = jnp.maximum(h2, 0.0)                            # (TB, 200) f32

    # Fused mu/logsig head: one matmul producing packed [mu | logsig].
    ms = jnp.dot(h2.astype(jnp.bfloat16), wms_ref[...],
                 preferred_element_type=jnp.float32) + bms_ref[...]   # (TB, 4)
    mu = ms[:, :LATENT_DIM]                              # (TB, 2)
    logsig = ms[:, LATENT_DIM:]                          # (TB, 2)

    # ---- reparameterization: z = z_prior * exp(0.5 * logsig) + mu ----
    std = jnp.exp(0.5 * logsig)                          # EUP
    z = zp_ref[...] * std + mu                           # (1,2) bcast -> (TB,2)

    # ---- decoder P(z) ----
    # K=2 matmul done as broadcast FMAs on the VPU (avoids a padded MXU push).
    h3 = b3_ref[...]                                     # (1, 200)
    for d in range(LATENT_DIM):
        h3 = h3 + z[:, d:d + 1] * w3_ref[d:d + 1, :]     # (TB, 200)
    h3 = jnp.maximum(h3, 0.0)

    h4 = jnp.dot(h3.astype(jnp.bfloat16), w4_ref[...],
                 preferred_element_type=jnp.float32) + b4_ref[...]
    h4 = jnp.maximum(h4, 0.0)                            # (TB, 200)
    logits = jnp.dot(h4.astype(jnp.bfloat16), w5_ref[...],
                     preferred_element_type=jnp.float32) + b5_ref[...]

    # sigmoid(x) = 0.5 * tanh(0.5 * x) + 0.5 -> single EUP push per element.
    y = 0.5 * jnp.tanh(0.5 * logits) + 0.5

    y_ref[...] = y.astype(y_ref.dtype)                   # (TB, 784) bf16
    ms_ref[...] = ms                                     # (TB, 4) packed [mu|logsig]


def _round_up(n, m):
    return ((n + m - 1) // m) * m


def _pick_tb(B):
    if B < 16:
        return B                      # single block; TB == B satisfies layout rule
    if B <= 256:
        return _round_up((B + 1) // 2, 8)   # two blocks -> shards across v7x cores
    return 256                        # fixed tile, cdiv grid, pipelined


def vae_forward(x, z_prior, params):
    """x: (B, 784) f32 (cast to bf16 for the kernel).  z_prior: (1, latent) f32.

    Returns (y_bf16, z_mu_f32, z_logsig_f32)."""
    B = x.shape[0]
    TB = _pick_tb(B)
    grid = (pl.cdiv(B, TB),)

    x_bf = x.astype(jnp.bfloat16)     # halve the dominant HBM read

    operands = [
        x_bf, z_prior,
        params["w1"], params["b1"],
        params["w2"], params["b2"],
        params["wms"], params["bms"],
        params["w3"], params["b3"],
        params["w4"], params["b4"],
        params["w5"], params["b5"],
    ]

    def const_spec(arr):
        # Full-array block, resident across the whole (batch) grid.
        return pl.BlockSpec(arr.shape, lambda i: (0,) * arr.ndim)

    in_specs = [
        pl.BlockSpec((TB, IN_DIM), lambda i: (i, 0)),          # x (bf16)
        const_spec(z_prior),                                   # z_prior
    ] + [const_spec(a) for a in operands[2:]]                  # weights/biases

    out_specs = (
        pl.BlockSpec((TB, IN_DIM), lambda i: (i, 0)),          # y (bf16)
        pl.BlockSpec((TB, 2 * LATENT_DIM), lambda i: (i, 0)),  # [mu | logsig]
    )
    out_shape = (
        jax.ShapeDtypeStruct((B, IN_DIM), jnp.bfloat16),
        jax.ShapeDtypeStruct((B, 2 * LATENT_DIM), jnp.float32),
    )

    flops = 2 * B * (IN_DIM * HID + HID * HID + HID * 2 * LATENT_DIM
                     + LATENT_DIM * HID + HID * HID + HID * IN_DIM)
    transcendentals = B * (LATENT_DIM + IN_DIM)
    bytes_accessed = (
        sum(int(a.size) * a.dtype.itemsize for a in operands)   # x(bf16)+weights
        + B * IN_DIM * 2                                        # y (bf16)
        + B * 2 * LATENT_DIM * 4                                # ms (f32)
    )

    y, ms = pl.pallas_call(
        _vae_kernel,
        grid=grid,
        out_shape=out_shape,
        in_specs=in_specs,
        out_specs=out_specs,
        compiler_params=pltpu.CompilerParams(
            dimension_semantics=("parallel",)),
        cost_estimate=pl.CostEstimate(
            flops=flops,
            transcendentals=transcendentals,
            bytes_accessed=bytes_accessed),
    )(*operands)

    z_mu = ms[:, :LATENT_DIM]
    z_logsig = ms[:, LATENT_DIM:]
    return y, z_mu, z_logsig


def _init_linear(key, fan_in, fan_out):
    # PyTorch nn.Linear default init: U(-1/sqrt(fan_in), 1/sqrt(fan_in)).
    kw, kb = jax.random.split(key)
    bound = 1.0 / jnp.sqrt(jnp.float32(fan_in))
    # stored as (in, out) == W^T relative to PyTorch's (out, in)
    w = jax.random.uniform(kw, (fan_in, fan_out), jnp.float32, -bound, bound)
    b = jax.random.uniform(kb, (1, fan_out), jnp.float32, -bound, bound)
    return w, b


def init_params(key):
    keys = jax.random.split(key, 7)
    p = {}
    w1, b1 = _init_linear(keys[0], IN_DIM, HID)
    w2, b2 = _init_linear(keys[1], HID, HID)
    wmu, bmu = _init_linear(keys[2], HID, LATENT_DIM)
    wsig, bsig = _init_linear(keys[3], HID, LATENT_DIM)
    w3, b3 = _init_linear(keys[4], LATENT_DIM, HID)
    w4, b4 = _init_linear(keys[5], HID, HID)
    w5, b5 = _init_linear(keys[6], HID, IN_DIM)

    # Big weights in bf16 (halve HBM traffic, native bf16 MXU); biases and the
    # tiny (2, 200) W3 stay f32.
    p["w1"], p["b1"] = w1.astype(jnp.bfloat16), b1
    p["w2"], p["b2"] = w2.astype(jnp.bfloat16), b2
    # Fused [mu | logsig] head.
    p["wms"] = jnp.concatenate([wmu, wsig], axis=1).astype(jnp.bfloat16)
    p["bms"] = jnp.concatenate([bmu, bsig], axis=1)
    p["w3"], p["b3"] = w3, b3
    p["w4"], p["b4"] = w4.astype(jnp.bfloat16), b4
    p["w5"], p["b5"] = w5.astype(jnp.bfloat16), b5
    return p


def _reference(x, z_prior, p):
    # Pure-JAX reference using the same (bf16) parameters and bf16 activations
    # on the matmul inputs (matches kernel numerics up to f32 accumulation).
    x = x.astype(jnp.bfloat16)

    def dot(a, w):
        a = a.astype(w.dtype) if w.dtype == jnp.bfloat16 else a
        return jnp.dot(a, w, preferred_element_type=jnp.float32)

    h1 = jax.nn.relu(dot(x, p["w1"]) + p["b1"])
    h2 = jax.nn.relu(dot(h1, p["w2"]) + p["b2"])
    ms = dot(h2, p["wms"]) + p["bms"]
    mu, logsig = ms[:, :LATENT_DIM], ms[:, LATENT_DIM:]
    z = z_prior * jnp.exp(0.5 * logsig) + mu
    h3 = jax.nn.relu(dot(z, p["w3"]) + p["b3"])
    h4 = jax.nn.relu(dot(h3, p["w4"]) + p["b4"])
    y = jax.nn.sigmoid(dot(h4, p["w5"]) + p["b5"])
    return y, mu, logsig


if __name__ == "__main__":
    key = jax.random.PRNGKey(0)
    k_params, k_x, k_prior = jax.random.split(key, 3)

    params = init_params(k_params)
    # z_prior ~ N(0, 1), shape (1, latent_dim), matching torch.randn(1, latent_dim)
    # (shared across the batch, exactly like the PyTorch reference).
    z_prior = jax.random.normal(k_prior, (1, LATENT_DIM), jnp.float32)

    # Primary small-shape test (B=8, single block).
    B = 8
    x = jax.random.uniform(k_x, (B, IN_DIM), jnp.float32)   # flattened 28x28 in [0,1)
    y, z_mu, z_logsig = vae_forward(x, z_prior, params)
    jax.block_until_ready((y, z_mu, z_logsig))

    y_ref, mu_ref, ls_ref = _reference(x, z_prior, params)
    assert jnp.allclose(y.astype(jnp.float32), y_ref, atol=1e-2, rtol=1e-2), "y mismatch"
    assert jnp.allclose(z_mu, mu_ref, atol=1e-2, rtol=1e-2), "z_mu mismatch"
    assert jnp.allclose(z_logsig, ls_ref, atol=1e-2, rtol=1e-2), "z_logsig mismatch"

    # Secondary test exercising the 2-block (megacore) grid with a partial
    # trailing block (B=24 -> TB=16, grid=(2,)).
    B2 = 24
    x2 = jax.random.uniform(jax.random.PRNGKey(1), (B2, IN_DIM), jnp.float32)
    y2, mu2, ls2 = vae_forward(x2, z_prior, params)
    jax.block_until_ready((y2, mu2, ls2))
    y2_ref, mu2_ref, ls2_ref = _reference(x2, z_prior, params)
    assert jnp.allclose(y2.astype(jnp.float32), y2_ref, atol=1e-2, rtol=1e-2), "y2 mismatch"
    assert jnp.allclose(mu2, mu2_ref, atol=1e-2, rtol=1e-2), "mu2 mismatch"
    assert jnp.allclose(ls2, ls2_ref, atol=1e-2, rtol=1e-2), "logsig2 mismatch"

    print("KERNEL_OK")
</pallas_src>

<mosaic_0001>
module attributes {stable_mosaic.version = 11 : i64} {
  func.func @_vae_kernel(%arg0: i32, %arg1: memref<8x784xbf16, #tpu.memory_space<vmem>>, %arg2: memref<1x2xf32, #tpu.memory_space<vmem>>, %arg3: memref<784x200xbf16, #tpu.memory_space<vmem>>, %arg4: memref<1x200xf32, #tpu.memory_space<vmem>>, %arg5: memref<200x200xbf16, #tpu.memory_space<vmem>>, %arg6: memref<1x200xf32, #tpu.memory_space<vmem>>, %arg7: memref<200x4xbf16, #tpu.memory_space<vmem>>, %arg8: memref<1x4xf32, #tpu.memory_space<vmem>>, %arg9: memref<2x200xf32, #tpu.memory_space<vmem>>, %arg10: memref<1x200xf32, #tpu.memory_space<vmem>>, %arg11: memref<200x200xbf16, #tpu.memory_space<vmem>>, %arg12: memref<1x200xf32, #tpu.memory_space<vmem>>, %arg13: memref<200x784xbf16, #tpu.memory_space<vmem>>, %arg14: memref<1x784xf32, #tpu.memory_space<vmem>>, %arg15: memref<8x784xbf16, #tpu.memory_space<vmem>>, %arg16: memref<8x4xf32, #tpu.memory_space<vmem>>) attributes {dimension_semantics = [#tpu.dimension_semantics<parallel>], iteration_bounds = array<i64: 1>, scalar_prefetch = 0 : i64, scratch_operands = 0 : i64, tpu.core_type = #tpu.core_type<tc>, window_params = [{transform_indices = @transform_0, window_bounds = array<i64: 8, 784>}, {pipeline_mode = #tpu.pipeline_mode<synchronous>, transform_indices = @transform_1, window_bounds = array<i64: 1, 2>}, {pipeline_mode = #tpu.pipeline_mode<synchronous>, transform_indices = @transform_2, window_bounds = array<i64: 784, 200>}, {pipeline_mode = #tpu.pipeline_mode<synchronous>, transform_indices = @transform_3, window_bounds = array<i64: 1, 200>}, {pipeline_mode = #tpu.pipeline_mode<synchronous>, transform_indices = @transform_4, window_bounds = array<i64: 200, 200>}, {pipeline_mode = #tpu.pipeline_mode<synchronous>, transform_indices = @transform_5, window_bounds = array<i64: 1, 200>}, {pipeline_mode = #tpu.pipeline_mode<synchronous>, transform_indices = @transform_6, window_bounds = array<i64: 200, 4>}, {pipeline_mode = #tpu.pipeline_mode<synchronous>, transform_indices = @transform_7, window_bounds = array<i64: 1, 4>}, {pipeline_mode = #tpu.pipeline_mode<synchronous>, transform_indices = @transform_8, window_bounds = array<i64: 2, 200>}, {pipeline_mode = #tpu.pipeline_mode<synchronous>, transform_indices = @transform_9, window_bounds = array<i64: 1, 200>}, {pipeline_mode = #tpu.pipeline_mode<synchronous>, transform_indices = @transform_10, window_bounds = array<i64: 200, 200>}, {pipeline_mode = #tpu.pipeline_mode<synchronous>, transform_indices = @transform_11, window_bounds = array<i64: 1, 200>}, {pipeline_mode = #tpu.pipeline_mode<synchronous>, transform_indices = @transform_12, window_bounds = array<i64: 200, 784>}, {pipeline_mode = #tpu.pipeline_mode<synchronous>, transform_indices = @transform_13, window_bounds = array<i64: 1, 784>}, {transform_indices = @transform_14, window_bounds = array<i64: 8, 784>}, {transform_indices = @transform_15, window_bounds = array<i64: 8, 4>}]} {
    %c0 = arith.constant 0 : index
    %c0_0 = arith.constant 0 : index
    %0 = vector.load %arg1[%c0, %c0_0] : memref<8x784xbf16, #tpu.memory_space<vmem>>, vector<8x784xbf16>
    %c0_1 = arith.constant 0 : index
    %c0_2 = arith.constant 0 : index
    %1 = vector.load %arg3[%c0_1, %c0_2] : memref<784x200xbf16, #tpu.memory_space<vmem>>, vector<784x200xbf16>
    %cst = arith.constant dense<0.000000e+00> : vector<8x200xf32>
    %2 = tpu.matmul %0, %1, %cst {dimension_numbers = #tpu.dot_dimension_numbers<[1], [0], [0], [1], [0, 0, 1, 1], [], []>} : vector<8x784xbf16>, vector<784x200xbf16>, vector<8x200xf32> -> vector<8x200xf32>
    %c0_3 = arith.constant 0 : index
    %c0_4 = arith.constant 0 : index
    %3 = vector.load %arg4[%c0_3, %c0_4] : memref<1x200xf32, #tpu.memory_space<vmem>>, vector<1x200xf32>
    %4 = vector.broadcast %3 : vector<1x200xf32> to vector<8x200xf32>
    %5 = arith.addf %2, %4 : vector<8x200xf32>
    %cst_5 = arith.constant 0.000000e+00 : f32
    %6 = vector.broadcast %cst_5 : f32 to vector<8x200xf32>
    %7 = arith.maximumf %5, %6 : vector<8x200xf32>
    %8 = arith.truncf %7 : vector<8x200xf32> to vector<8x200xbf16>
    %c0_6 = arith.constant 0 : index
    %c0_7 = arith.constant 0 : index
    %9 = vector.load %arg5[%c0_6, %c0_7] : memref<200x200xbf16, #tpu.memory_space<vmem>>, vector<200x200xbf16>
    %cst_8 = arith.constant dense<0.000000e+00> : vector<8x200xf32>
    %10 = tpu.matmul %8, %9, %cst_8 {dimension_numbers = #tpu.dot_dimension_numbers<[1], [0], [0], [1], [0, 0, 1, 1], [], []>} : vector<8x200xbf16>, vector<200x200xbf16>, vector<8x200xf32> -> vector<8x200xf32>
    %c0_9 = arith.constant 0 : index
    %c0_10 = arith.constant 0 : index
    %11 = vector.load %arg6[%c0_9, %c0_10] : memref<1x200xf32, #tpu.memory_space<vmem>>, vector<1x200xf32>
    %12 = vector.broadcast %11 : vector<1x200xf32> to vector<8x200xf32>
    %13 = arith.addf %10, %12 : vector<8x200xf32>
    %cst_11 = arith.constant 0.000000e+00 : f32
    %14 = vector.broadcast %cst_11 : f32 to vector<8x200xf32>
    %15 = arith.maximumf %13, %14 : vector<8x200xf32>
    %16 = arith.truncf %15 : vector<8x200xf32> to vector<8x200xbf16>
    %c0_12 = arith.constant 0 : index
    %c0_13 = arith.constant 0 : index
    %17 = vector.load %arg7[%c0_12, %c0_13] : memref<200x4xbf16, #tpu.memory_space<vmem>>, vector<200x4xbf16>
    %cst_14 = arith.constant dense<0.000000e+00> : vector<8x4xf32>
    %18 = tpu.matmul %16, %17, %cst_14 {dimension_numbers = #tpu.dot_dimension_numbers<[1], [0], [0], [1], [0, 0, 1, 1], [], []>} : vector<8x200xbf16>, vector<200x4xbf16>, vector<8x4xf32> -> vector<8x4xf32>
    %c0_15 = arith.constant 0 : index
    %c0_16 = arith.constant 0 : index
    %19 = vector.load %arg8[%c0_15, %c0_16] : memref<1x4xf32, #tpu.memory_space<vmem>>, vector<1x4xf32>
    %20 = vector.broadcast %19 : vector<1x4xf32> to vector<8x4xf32>
    %21 = arith.addf %18, %20 : vector<8x4xf32>
    %22 = vector.extract_strided_slice %21 {offsets = [0, 0], sizes = [8, 2], strides = [1, 1]} : vector<8x4xf32> to vector<8x2xf32>
    %23 = vector.extract_strided_slice %21 {offsets = [0, 2], sizes = [8, 2], strides = [1, 1]} : vector<8x4xf32> to vector<8x2xf32>
    %cst_17 = arith.constant 5.000000e-01 : f32
    %24 = vector.broadcast %cst_17 : f32 to vector<8x2xf32>
    %25 = arith.mulf %24, %23 : vector<8x2xf32>
    %26 = math.exp %25 : vector<8x2xf32>
    %c0_18 = arith.constant 0 : index
    %c0_19 = arith.constant 0 : index
    %27 = vector.load %arg2[%c0_18, %c0_19] : memref<1x2xf32, #tpu.memory_space<vmem>>, vector<1x2xf32>
    %28 = vector.broadcast %27 : vector<1x2xf32> to vector<8x2xf32>
    %29 = arith.mulf %28, %26 : vector<8x2xf32>
    %30 = arith.addf %29, %22 : vector<8x2xf32>
    %c0_20 = arith.constant 0 : index
    %c0_21 = arith.constant 0 : index
    %31 = vector.load %arg10[%c0_20, %c0_21] : memref<1x200xf32, #tpu.memory_space<vmem>>, vector<1x200xf32>
    %32 = vector.extract_strided_slice %30 {offsets = [0, 0], sizes = [8, 1], strides = [1, 1]} : vector<8x2xf32> to vector<8x1xf32>
    %c0_22 = arith.constant 0 : index
    %c0_23 = arith.constant 0 : index
    %33 = vector.load %arg9[%c0_22, %c0_23] : memref<2x200xf32, #tpu.memory_space<vmem>>, vector<1x200xf32>
    %34 = vector.broadcast %32 : vector<8x1xf32> to vector<8x200xf32>
    %35 = vector.broadcast %33 : vector<1x200xf32> to vector<8x200xf32>
    %36 = arith.mulf %34, %35 : vector<8x200xf32>
    %37 = vector.broadcast %31 : vector<1x200xf32> to vector<8x200xf32>
    %38 = arith.addf %37, %36 : vector<8x200xf32>
    %39 = vector.extract_strided_slice %30 {offsets = [0, 1], sizes = [8, 1], strides = [1, 1]} : vector<8x2xf32> to vector<8x1xf32>
    %c1 = arith.constant 1 : index
    %c0_24 = arith.constant 0 : index
    %40 = vector.load %arg9[%c1, %c0_24] : memref<2x200xf32, #tpu.memory_space<vmem>>, vector<1x200xf32>
    %41 = vector.broadcast %39 : vector<8x1xf32> to vector<8x200xf32>
    %42 = vector.broadcast %40 : vector<1x200xf32> to vector<8x200xf32>
    %43 = arith.mulf %41, %42 : vector<8x200xf32>
    %44 = arith.addf %38, %43 : vector<8x200xf32>
    %cst_25 = arith.constant 0.000000e+00 : f32
    %45 = vector.broadcast %cst_25 : f32 to vector<8x200xf32>
    %46 = arith.maximumf %44, %45 : vector<8x200xf32>
    %47 = arith.truncf %46 : vector<8x200xf32> to vector<8x200xbf16>
    %c0_26 = arith.constant 0 : index
    %c0_27 = arith.constant 0 : index
    %48 = vector.load %arg11[%c0_26, %c0_27] : memref<200x200xbf16, #tpu.memory_space<vmem>>, vector<200x200xbf16>
    %cst_28 = arith.constant dense<0.000000e+00> : vector<8x200xf32>
    %49 = tpu.matmul %47, %48, %cst_28 {dimension_numbers = #tpu.dot_dimension_numbers<[1], [0], [0], [1], [0, 0, 1, 1], [], []>} : vector<8x200xbf16>, vector<200x200xbf16>, vector<8x200xf32> -> vector<8x200xf32>
    %c0_29 = arith.constant 0 : index
    %c0_30 = arith.constant 0 : index
    %50 = vector.load %arg12[%c0_29, %c0_30] : memref<1x200xf32, #tpu.memory_space<vmem>>, vector<1x200xf32>
    %51 = vector.broadcast %50 : vector<1x200xf32> to vector<8x200xf32>
    %52 = arith.addf %49, %51 : vector<8x200xf32>
    %cst_31 = arith.constant 0.000000e+00 : f32
    %53 = vector.broadcast %cst_31 : f32 to vector<8x200xf32>
    %54 = arith.maximumf %52, %53 : vector<8x200xf32>
    %55 = arith.truncf %54 : vector<8x200xf32> to vector<8x200xbf16>
    %c0_32 = arith.constant 0 : index
    %c0_33 = arith.constant 0 : index
    %56 = vector.load %arg13[%c0_32, %c0_33] : memref<200x784xbf16, #tpu.memory_space<vmem>>, vector<200x784xbf16>
    %cst_34 = arith.constant dense<0.000000e+00> : vector<8x784xf32>
    %57 = tpu.matmul %55, %56, %cst_34 {dimension_numbers = #tpu.dot_dimension_numbers<[1], [0], [0], [1], [0, 0, 1, 1], [], []>} : vector<8x200xbf16>, vector<200x784xbf16>, vector<8x784xf32> -> vector<8x784xf32>
    %c0_35 = arith.constant 0 : index
    %c0_36 = arith.constant 0 : index
    %58 = vector.load %arg14[%c0_35, %c0_36] : memref<1x784xf32, #tpu.memory_space<vmem>>, vector<1x784xf32>
    %59 = vector.broadcast %58 : vector<1x784xf32> to vector<8x784xf32>
    %60 = arith.addf %57, %59 : vector<8x784xf32>
    %cst_37 = arith.constant 5.000000e-01 : f32
    %61 = vector.broadcast %cst_37 : f32 to vector<8x784xf32>
    %62 = arith.mulf %61, %60 : vector<8x784xf32>
    %63 = math.tanh %62 : vector<8x784xf32>
    %cst_38 = arith.constant 5.000000e-01 : f32
    %64 = vector.broadcast %cst_38 : f32 to vector<8x784xf32>
    %65 = arith.mulf %64, %63 : vector<8x784xf32>
    %cst_39 = arith.constant 5.000000e-01 : f32
    %66 = vector.broadcast %cst_39 : f32 to vector<8x784xf32>
    %67 = arith.addf %65, %66 : vector<8x784xf32>
    %68 = arith.truncf %67 : vector<8x784xf32> to vector<8x784xbf16>
    %c0_40 = arith.constant 0 : index
    %c0_41 = arith.constant 0 : index
    %69 = vector.load %arg15[%c0_40, %c0_41] : memref<8x784xbf16, #tpu.memory_space<vmem>>, vector<8x784xbf16>
    tpu.vector_store %arg15[%c0_40, %c0_41], %68 {strides = array<i32>} : memref<8x784xbf16, #tpu.memory_space<vmem>>, vector<8x784xbf16>,
    %c0_42 = arith.constant 0 : index
    %c0_43 = arith.constant 0 : index
    %70 = vector.load %arg16[%c0_42, %c0_43] : memref<8x4xf32, #tpu.memory_space<vmem>>, vector<8x4xf32>
    tpu.vector_store %arg16[%c0_42, %c0_43], %21 {strides = array<i32>} : memref<8x4xf32, #tpu.memory_space<vmem>>, vector<8x4xf32>,
    return
  }
  func.func @transform_0(%arg0: i32) -> (i32, i32) {
    %c0_i32 = arith.constant 0 : i32
    %c0_i32_0 = arith.constant 0 : i32
    return %arg0, %c0_i32 : i32, i32
  }
  func.func @transform_1(%arg0: i32) -> (i32, i32) {
    %c0_i32 = arith.constant 0 : i32
    %c0_i32_0 = arith.constant 0 : i32
    %c0_i32_1 = arith.constant 0 : i32
    return %c0_i32, %c0_i32_0 : i32, i32
  }
  func.func @transform_2(%arg0: i32) -> (i32, i32) {
    %c0_i32 = arith.constant 0 : i32
    %c0_i32_0 = arith.constant 0 : i32
    %c0_i32_1 = arith.constant 0 : i32
    return %c0_i32, %c0_i32_0 : i32, i32
  }
  func.func @transform_3(%arg0: i32) -> (i32, i32) {
    %c0_i32 = arith.constant 0 : i32
    %c0_i32_0 = arith.constant 0 : i32
    %c0_i32_1 = arith.constant 0 : i32
    return %c0_i32, %c0_i32_0 : i32, i32
  }
  func.func @transform_4(%arg0: i32) -> (i32, i32) {
    %c0_i32 = arith.constant 0 : i32
    %c0_i32_0 = arith.constant 0 : i32
    %c0_i32_1 = arith.constant 0 : i32
    return %c0_i32, %c0_i32_0 : i32, i32
  }
  func.func @transform_5(%arg0: i32) -> (i32, i32) {
    %c0_i32 = arith.constant 0 : i32
    %c0_i32_0 = arith.constant 0 : i32
    %c0_i32_1 = arith.constant 0 : i32
    return %c0_i32, %c0_i32_0 : i32, i32
  }
  func.func @transform_6(%arg0: i32) -> (i32, i32) {
    %c0_i32 = arith.constant 0 : i32
    %c0_i32_0 = arith.constant 0 : i32
    %c0_i32_1 = arith.constant 0 : i32
    return %c0_i32, %c0_i32_0 : i32, i32
  }
  func.func @transform_7(%arg0: i32) -> (i32, i32) {
    %c0_i32 = arith.constant 0 : i32
    %c0_i32_0 = arith.constant 0 : i32
    %c0_i32_1 = arith.constant 0 : i32
    return %c0_i32, %c0_i32_0 : i32, i32
  }
  func.func @transform_8(%arg0: i32) -> (i32, i32) {
    %c0_i32 = arith.constant 0 : i32
    %c0_i32_0 = arith.constant 0 : i32
    %c0_i32_1 = arith.constant 0 : i32
    return %c0_i32, %c0_i32_0 : i32, i32
  }
  func.func @transform_9(%arg0: i32) -> (i32, i32) {
    %c0_i32 = arith.constant 0 : i32
    %c0_i32_0 = arith.constant 0 : i32
    %c0_i32_1 = arith.constant 0 : i32
    return %c0_i32, %c0_i32_0 : i32, i32
  }
  func.func @transform_10(%arg0: i32) -> (i32, i32) {
    %c0_i32 = arith.constant 0 : i32
    %c0_i32_0 = arith.constant 0 : i32
    %c0_i32_1 = arith.constant 0 : i32
    return %c0_i32, %c0_i32_0 : i32, i32
  }
  func.func @transform_11(%arg0: i32) -> (i32, i32) {
    %c0_i32 = arith.constant 0 : i32
    %c0_i32_0 = arith.constant 0 : i32
    %c0_i32_1 = arith.constant 0 : i32
    return %c0_i32, %c0_i32_0 : i32, i32
  }
  func.func @transform_12(%arg0: i32) -> (i32, i32) {
    %c0_i32 = arith.constant 0 : i32
    %c0_i32_0 = arith.constant 0 : i32
    %c0_i32_1 = arith.constant 0 : i32
    return %c0_i32, %c0_i32_0 : i32, i32
  }
  func.func @transform_13(%arg0: i32) -> (i32, i32) {
    %c0_i32 = arith.constant 0 : i32
    %c0_i32_0 = arith.constant 0 : i32
    %c0_i32_1 = arith.constant 0 : i32
    return %c0_i32, %c0_i32_0 : i32, i32
  }
  func.func @transform_14(%arg0: i32) -> (i32, i32) {
    %c0_i32 = arith.constant 0 : i32
    %c0_i32_0 = arith.constant 0 : i32
    return %arg0, %c0_i32 : i32, i32
  }
  func.func @transform_15(%arg0: i32) -> (i32, i32) {
    %c0_i32 = arith.constant 0 : i32
    %c0_i32_0 = arith.constant 0 : i32
    return %arg0, %c0_i32 : i32, i32
  }
}

</mosaic_0001>

<llo_original>
// kernel: tpu_custom_call.1
$region0: #{tpu_custom_call.1}
  #allocation0 [shape = 'u32[]', space=smem, size = 0x4, offset = 0x4, fixed_abs, tag = 'smem constant byte address 0x4 - core index']
  #allocation1 [shape = 'u32[144,128]{1,0:T(1,128)}', space=vmem, size = 0x12000, scoped, tag = 'internal scratch']
  %s0 = inlined_call_operand.vmem [shape: bf16[8,784], index: 0, kind: input, shape index: {}]
  %s1 = inlined_call_operand.vmem [shape: f32[1,2], index: 1, kind: input, shape index: {}]
  %s2 = inlined_call_operand.vmem [shape: bf16[784,200], index: 2, kind: input, shape index: {}]
  %s3 = inlined_call_operand.vmem [shape: f32[1,200], index: 3, kind: input, shape index: {}]
  %s4 = inlined_call_operand.vmem [shape: bf16[200,200], index: 4, kind: input, shape index: {}]
  %s5 = inlined_call_operand.vmem [shape: f32[1,200], index: 5, kind: input, shape index: {}]
  %s6 = inlined_call_operand.vmem [shape: bf16[200,4], index: 6, kind: input, shape index: {}]
  %s7 = inlined_call_operand.vmem [shape: f32[1,4], index: 7, kind: input, shape index: {}]
  %s8 = inlined_call_operand.vmem [shape: f32[2,200], index: 8, kind: input, shape index: {}]
  %s9 = inlined_call_operand.vmem [shape: f32[1,200], index: 9, kind: input, shape index: {}]
  %s10 = inlined_call_operand.vmem [shape: bf16[200,200], index: 10, kind: input, shape index: {}]
  %s11 = inlined_call_operand.vmem [shape: f32[1,200], index: 11, kind: input, shape index: {}]
  %s12 = inlined_call_operand.vmem [shape: bf16[200,784], index: 12, kind: input, shape index: {}]
  %s13 = inlined_call_operand.vmem [shape: f32[1,784], index: 13, kind: input, shape index: {}]
  %s14 = inlined_call_operand.hbm [shape: bf16[8,784], index: 14, kind: output, shape index: {0}]
  %s15 = inlined_call_operand.vmem [shape: f32[8,4], index: 15, kind: output, shape index: {1}]
  %16 = xla_tuple %s14, %s15
  %s17 = sld [smem:[#allocation0]]
  $region74: #{tpu_custom_call.1} parent=0
    _
  %s19 = ssub.s32 1, %s17
  %s20 = scalar_select 0, %s19, %s17
  $region1: #{tpu_custom_call.1} parent=0
    #allocation2 [shape = 'u8[14336]{0}', space=vmem, size = 0x3800, scoped, tag = 'output window, operand 0, single buffered']
    #allocation3 [shape = 's32[1]{0}', space=sflag, size = 0x4, scoped, tag = 'scoped memory for tpu_custom_call.1']
    %21 = vsyncpa [#allocation3], 0
    // Predicated region
    $region2: #{tpu_custom_call.1} parent=1 // pred_check
      _
    $region3: #{tpu_custom_call.1} parent=1 // pred_check_branch
      %23 = sbr.rel (0) target = $region5
    $region4: #{tpu_custom_call.1} parent=1 // pred_region
      _
    $region5: #{tpu_custom_call.1} parent=1 // pred_fallthru
      _
    // Predicated region
    $region6: #{tpu_custom_call.1} parent=1 // pred_check
      _
    $region7: #{tpu_custom_call.1} parent=1 // pred_check_branch
      %25 = sbr.rel (0) target = $region9
    $region8: #{tpu_custom_call.1} parent=1 // pred_region
      _
    $region9: #{tpu_custom_call.1} parent=1 // pred_fallthru
      _
    // Predicated region
    $region10: #{tpu_custom_call.1} parent=1 // pred_check
      _
    $region11: #{tpu_custom_call.1} parent=1 // pred_check_branch
      %27 = sbr.rel (0) target = $region13
    $region12: #{tpu_custom_call.1} parent=1 // pred_region
      _
    $region13: #{tpu_custom_call.1} parent=1 // pred_fallthru
      _
    // Predicated region
    $region14: #{tpu_custom_call.1} parent=1 // pred_check
      _
    $region15: #{tpu_custom_call.1} parent=1 // pred_check_branch
      %29 = sbr.rel (0) target = $region17
    $region16: #{tpu_custom_call.1} parent=1 // pred_region
      _
    $region17: #{tpu_custom_call.1} parent=1 // pred_fallthru
      _
    // Predicated region
    $region18: #{tpu_custom_call.1} parent=1 // pred_check
      _
    $region19: #{tpu_custom_call.1} parent=1 // pred_check_branch
      %31 = sbr.rel (0) target = $region21
    $region20: #{tpu_custom_call.1} parent=1 // pred_region
      _
    $region21: #{tpu_custom_call.1} parent=1 // pred_fallthru
      _
    // Predicated region
    $region22: #{tpu_custom_call.1} parent=1 // pred_check
      _
    $region23: #{tpu_custom_call.1} parent=1 // pred_check_branch
      %33 = sbr.rel (0) target = $region25
    $region24: #{tpu_custom_call.1} parent=1 // pred_region
      _
    $region25: #{tpu_custom_call.1} parent=1 // pred_fallthru
      _
    // Predicated region
    $region26: #{tpu_custom_call.1} parent=1 // pred_check
      _
    $region27: #{tpu_custom_call.1} parent=1 // pred_check_branch
      %35 = sbr.rel (0) target = $region29
    $region28: #{tpu_custom_call.1} parent=1 // pred_region
      _
    $region29: #{tpu_custom_call.1} parent=1 // pred_fallthru
      _
    // Predicated region
    $region30: #{tpu_custom_call.1} parent=1 // pred_check
      _
    $region31: #{tpu_custom_call.1} parent=1 // pred_check_branch
      %37 = sbr.rel (0) target = $region33
    $region32: #{tpu_custom_call.1} parent=1 // pred_region
      _
    $region33: #{tpu_custom_call.1} parent=1 // pred_fallthru
      _
    // Predicated region
    $region34: #{tpu_custom_call.1} parent=1 // pred_check
      _
    $region35: #{tpu_custom_call.1} parent=1 // pred_check_branch
      %39 = sbr.rel (0) target = $region37
    $region36: #{tpu_custom_call.1} parent=1 // pred_region
      _
    $region37: #{tpu_custom_call.1} parent=1 // pred_fallthru
      _
    // Predicated region
    $region38: #{tpu_custom_call.1} parent=1 // pred_check
      _
    $region39: #{tpu_custom_call.1} parent=1 // pred_check_branch
      %41 = sbr.rel (0) target = $region41
    $region40: #{tpu_custom_call.1} parent=1 // pred_region
      _
    $region41: #{tpu_custom_call.1} parent=1 // pred_fallthru
      _
    // Predicated region
    $region42: #{tpu_custom_call.1} parent=1 // pred_check
      _
    $region43: #{tpu_custom_call.1} parent=1 // pred_check_branch
      %43 = sbr.rel (0) target = $region45
    $region44: #{tpu_custom_call.1} parent=1 // pred_region
      _
    $region45: #{tpu_custom_call.1} parent=1 // pred_fallthru
      _
    // Predicated region
    $region46: #{tpu_custom_call.1} parent=1 // pred_check
      _
    $region47: #{tpu_custom_call.1} parent=1 // pred_check_branch
      %45 = sbr.rel (0) target = $region49
    $region48: #{tpu_custom_call.1} parent=1 // pred_region
      _
    $region49: #{tpu_custom_call.1} parent=1 // pred_fallthru
      _
    // Predicated region
    $region50: #{tpu_custom_call.1} parent=1 // pred_check
      _
    $region51: #{tpu_custom_call.1} parent=1 // pred_check_branch
      %47 = sbr.rel (0) target = $region53
    $region52: #{tpu_custom_call.1} parent=1 // pred_region
      _
    $region53: #{tpu_custom_call.1} parent=1 // pred_fallthru
      _
    // Predicated region
    $region54: #{tpu_custom_call.1} parent=1 // pred_check
      _
    $region55: #{tpu_custom_call.1} parent=1 // pred_check_branch
      %49 = sbr.rel (0) target = $region57
    $region56: #{tpu_custom_call.1} parent=1 // pred_region
      _
    $region57: #{tpu_custom_call.1} parent=1 // pred_fallthru
      _
    %v51 = vld [vmem:[%s0] sm:$0xff]
    %v52 = vld [vmem:[%s0 + $0x8] sm:$0xff]
    %v53 = vld [vmem:[%s0 + $0x10] sm:$0xff]
    %v54 = vld [vmem:[%s0 + $0x18] sm:$0xf]
    %v55 = vld [vmem:[%s2] sm:$0xff]
    %v56 = vld [vmem:[%s2 + $0x8] sm:$0xff]
    %v57 = vld [vmem:[%s2 + $0x10] sm:$0xff]
    %v58 = vld [vmem:[%s2 + $0x18] sm:$0xff]
    %v59 = vld [vmem:[%s2 + $0x20] sm:$0xff]
    %v60 = vld [vmem:[%s2 + $0x28] sm:$0xff]
    %v61 = vld [vmem:[%s2 + $0x30] sm:$0xff]
    %v62 = vld [vmem:[%s2 + $0x38] sm:$0xff]
    %v63 = vld [vmem:[%s2 + $0x40] sm:$0xff]
    %v64 = vld [vmem:[%s2 + $0x48] sm:$0xff]
    %v65 = vld [vmem:[%s2 + $0x50] sm:$0xff]
    %v66 = vld [vmem:[%s2 + $0x58] sm:$0xff]
    %v67 = vld [vmem:[%s2 + $0x60] sm:$0xff]
    %v68 = vld [vmem:[%s2 + $0x68] sm:$0xff]
    %v69 = vld [vmem:[%s2 + $0x70] sm:$0xff]
    %v70 = vld [vmem:[%s2 + $0x78] sm:$0xff]
    %v71 = vld [vmem:[%s2 + $0x80] sm:$0xff]
    %v72 = vld [vmem:[%s2 + $0x88] sm:$0xff]
    %v73 = vld [vmem:[%s2 + $0x90] sm:$0xff]
    %v74 = vld [vmem:[%s2 + $0x98] sm:$0xff]
    %v75 = vld [vmem:[%s2 + $0xa0] sm:$0xff]
    %v76 = vld [vmem:[%s2 + $0xa8] sm:$0xff]
    %v77 = vld [vmem:[%s2 + $0xb0] sm:$0xff]
    %v78 = vld [vmem:[%s2 + $0xb8] sm:$0xff]
    %v79 = vld [vmem:[%s2 + $0xc0] sm:$0xff]
    %v80 = vld [vmem:[%s2 + $0xc8] sm:$0xff]
    %v81 = vld [vmem:[%s2 + $0xd0] sm:$0xff]
    %v82 = vld [vmem:[%s2 + $0xd8] sm:$0xff]
    %v83 = vld [vmem:[%s2 + $0xe0] sm:$0xff]
    %v84 = vld [vmem:[%s2 + $0xe8] sm:$0xff]
    %v85 = vld [vmem:[%s2 + $0xf0] sm:$0xff]
    %v86 = vld [vmem:[%s2 + $0xf8] sm:$0xff]
    %v87 = vld [vmem:[%s2 + $0x100] sm:$0xff]
    %v88 = vld [vmem:[%s2 + $0x108] sm:$0xff]
    %v89 = vld [vmem:[%s2 + $0x110] sm:$0xff]
    %v90 = vld [vmem:[%s2 + $0x118] sm:$0xff]
    %v91 = vld [vmem:[%s2 + $0x120] sm:$0xff]
    %v92 = vld [vmem:[%s2 + $0x128] sm:$0xff]
    %v93 = vld [vmem:[%s2 + $0x130] sm:$0xff]
    %v94 = vld [vmem:[%s2 + $0x138] sm:$0xff]
    %v95 = vld [vmem:[%s2 + $0x140] sm:$0xff]
    %v96 = vld [vmem:[%s2 + $0x148] sm:$0xff]
    %v97 = vld [vmem:[%s2 + $0x150] sm:$0xff]
    %v98 = vld [vmem:[%s2 + $0x158] sm:$0xff]
    %v99 = vld [vmem:[%s2 + $0x160] sm:$0xff]
    %v100 = vld [vmem:[%s2 + $0x168] sm:$0xff]
    %v101 = vld [vmem:[%s2 + $0x170] sm:$0xff]
    %v102 = vld [vmem:[%s2 + $0x178] sm:$0xff]
    %v103 = vld [vmem:[%s2 + $0x180] sm:$0xff]
    %v104 = vld [vmem:[%s2 + $0x188] sm:$0xff]
    %v105 = vld [vmem:[%s2 + $0x190] sm:$0xff]
    %v106 = vld [vmem:[%s2 + $0x198] sm:$0xff]
    %v107 = vld [vmem:[%s2 + $0x1a0] sm:$0xff]
    %v108 = vld [vmem:[%s2 + $0x1a8] sm:$0xff]
    %v109 = vld [vmem:[%s2 + $0x1b0] sm:$0xff]
    %v110 = vld [vmem:[%s2 + $0x1b8] sm:$0xff]
    %v111 = vld [vmem:[%s2 + $0x1c0] sm:$0xff]
    %v112 = vld [vmem:[%s2 + $0x1c8] sm:$0xff]
    %v113 = vld [vmem:[%s2 + $0x1d0] sm:$0xff]
    %v114 = vld [vmem:[%s2 + $0x1d8] sm:$0xff]
    %v115 = vld [vmem:[%s2 + $0x1e0] sm:$0xff]
    %v116 = vld [vmem:[%s2 + $0x1e8] sm:$0xff]
    %v117 = vld [vmem:[%s2 + $0x1f0] sm:$0xff]
    %v118 = vld [vmem:[%s2 + $0x1f8] sm:$0xff]
    %v119 = vld [vmem:[%s2 + $0x200] sm:$0xff]
    %v120 = vld [vmem:[%s2 + $0x208] sm:$0xff]
    %v121 = vld [vmem:[%s2 + $0x210] sm:$0xff]
    %v122 = vld [vmem:[%s2 + $0x218] sm:$0xff]
    %v123 = vld [vmem:[%s2 + $0x220] sm:$0xff]
    %v124 = vld [vmem:[%s2 + $0x228] sm:$0xff]
    %v125 = vld [vmem:[%s2 + $0x230] sm:$0xff]
    %v126 = vld [vmem:[%s2 + $0x238] sm:$0xff]
    %v127 = vld [vmem:[%s2 + $0x240] sm:$0xff]
    %v128 = vld [vmem:[%s2 + $0x248] sm:$0xff]
    %v129 = vld [vmem:[%s2 + $0x250] sm:$0xff]
    %v130 = vld [vmem:[%s2 + $0x258] sm:$0xff]
    %v131 = vld [vmem:[%s2 + $0x260] sm:$0xff]
    %v132 = vld [vmem:[%s2 + $0x268] sm:$0xff]
    %v133 = vld [vmem:[%s2 + $0x270] sm:$0xff]
    %v134 = vld [vmem:[%s2 + $0x278] sm:$0xff]
    %v135 = vld [vmem:[%s2 + $0x280] sm:$0xff]
    %v136 = vld [vmem:[%s2 + $0x288] sm:$0xff]
    %v137 = vld [vmem:[%s2 + $0x290] sm:$0xff]
    %v138 = vld [vmem:[%s2 + $0x298] sm:$0xff]
    %v139 = vld [vmem:[%s2 + $0x2a0] sm:$0xff]
    %v140 = vld [vmem:[%s2 + $0x2a8] sm:$0xff]
    %v141 = vld [vmem:[%s2 + $0x2b0] sm:$0xff]
    %v142 = vld [vmem:[%s2 + $0x2b8] sm:$0xff]
    %v143 = vld [vmem:[%s2 + $0x2c0] sm:$0xff]
    %v144 = vld [vmem:[%s2 + $0x2c8] sm:$0xff]
    %v145 = vld [vmem:[%s2 + $0x2d0] sm:$0xff]
    %v146 = vld [vmem:[%s2 + $0x2d8] sm:$0xff]
    %v147 = vld [vmem:[%s2 + $0x2e0] sm:$0xff]
    %v148 = vld [vmem:[%s2 + $0x2e8] sm:$0xff]
    %v149 = vld [vmem:[%s2 + $0x2f0] sm:$0xff]
    %v150 = vld [vmem:[%s2 + $0x2f8] sm:$0xff]
    %v151 = vld [vmem:[%s2 + $0x300] sm:$0xff]
    %v152 = vld [vmem:[%s2 + $0x308] sm:$0xff]
    %v153 = vld [vmem:[%s3] sm:$0x3]
    %v155 = vlaneseq
    %v156 = vshrl.u32 %v155, 7
    %v157 = vsub.s32 0, %v156
    %v158 = vrot.slane %v153, %v157
    %v159 = vlaneseq
    %v160 = vshrl.u32 %v159, 7
    %v161 = vsub.s32 1, %v160
    %v162 = vrot.slane %v153, %v161
    %v169 = vunpack.c.l.b16 %v51
    %v170 = vunpack.c.h.b16 %v51
    %v171 = vunpack.c.l.b16 %v52
    %v172 = vunpack.c.h.b16 %v52
    %v173 = vunpack.c.l.b16 %v53
    %v174 = vunpack.c.h.b16 %v53
    %v175 = vunpack.c.l.b16 %v54
    %v176 = vpack.c.b16 %v169, %v169
    %v177 = vpack.c.b16 %v170, %v170
    %v178 = vpack.c.b16 %v171, %v171
    %v179 = vpack.c.b16 %v172, %v172
    %v180 = vpack.c.b16 %v173, %v173
    %v181 = vpack.c.b16 %v174, %v174
    %v182 = vpack.c.b16 %v175, %v175
    %v287 = vunpack.c.l.b16 %v55
    %v288 = vunpack.c.h.b16 %v55
    %v289 = vunpack.c.l.b16 %v56
    %v290 = vunpack.c.h.b16 %v56
    %v291 = vunpack.c.l.b16 %v57
    %v292 = vunpack.c.h.b16 %v57
    %v293 = vunpack.c.l.b16 %v58
    %v294 = vunpack.c.h.b16 %v58
    %v295 = vunpack.c.l.b16 %v59
    %v296 = vunpack.c.h.b16 %v59
    %v297 = vunpack.c.l.b16 %v60
    %v298 = vunpack.c.h.b16 %v60
    %v299 = vunpack.c.l.b16 %v61
    %v300 = vunpack.c.h.b16 %v61
    %v301 = vunpack.c.l.b16 %v62
    %v302 = vunpack.c.h.b16 %v62
    %v303 = vunpack.c.l.b16 %v63
    %v304 = vunpack.c.h.b16 %v63
    %v305 = vunpack.c.l.b16 %v64
    %v306 = vunpack.c.h.b16 %v64
    %v307 = vunpack.c.l.b16 %v65
    %v308 = vunpack.c.h.b16 %v65
    %v309 = vunpack.c.l.b16 %v66
    %v310 = vunpack.c.h.b16 %v66
    %v311 = vunpack.c.l.b16 %v67
    %v312 = vunpack.c.h.b16 %v67
    %v313 = vunpack.c.l.b16 %v68
    %v314 = vunpack.c.h.b16 %v68
    %v315 = vunpack.c.l.b16 %v69
    %v316 = vunpack.c.h.b16 %v69
    %v317 = vunpack.c.l.b16 %v70
    %v318 = vunpack.c.h.b16 %v70
    %v319 = vunpack.c.l.b16 %v71
    %v320 = vunpack.c.h.b16 %v71
    %v321 = vunpack.c.l.b16 %v72
    %v322 = vunpack.c.h.b16 %v72
    %v323 = vunpack.c.l.b16 %v73
    %v324 = vunpack.c.h.b16 %v73
    %v325 = vunpack.c.l.b16 %v74
    %v326 = vunpack.c.h.b16 %v74
    %v327 = vunpack.c.l.b16 %v75
    %v328 = vunpack.c.h.b16 %v75
    %v329 = vunpack.c.l.b16 %v76
    %v330 = vunpack.c.h.b16 %v76
    %v331 = vunpack.c.l.b16 %v77
    %v332 = vunpack.c.h.b16 %v77
    %v333 = vunpack.c.l.b16 %v78
    %v334 = vunpack.c.h.b16 %v78
    %v335 = vunpack.c.l.b16 %v79
    %v336 = vunpack.c.h.b16 %v79
    %v337 = vunpack.c.l.b16 %v80
    %v338 = vunpack.c.h.b16 %v80
    %v339 = vunpack.c.l.b16 %v81
    %v340 = vunpack.c.h.b16 %v81
    %v341 = vunpack.c.l.b16 %v82
    %v342 = vunpack.c.h.b16 %v82
    %v343 = vunpack.c.l.b16 %v83
    %v344 = vunpack.c.h.b16 %v83
    %v345 = vunpack.c.l.b16 %v84
    %v346 = vunpack.c.h.b16 %v84
    %v347 = vunpack.c.l.b16 %v85
    %v348 = vunpack.c.h.b16 %v85
    %v349 = vunpack.c.l.b16 %v86
    %v350 = vunpack.c.h.b16 %v86
    %v351 = vunpack.c.l.b16 %v87
    %v352 = vunpack.c.h.b16 %v87
    %v353 = vunpack.c.l.b16 %v88
    %v354 = vunpack.c.h.b16 %v88
    %v355 = vunpack.c.l.b16 %v89
    %v356 = vunpack.c.h.b16 %v89
    %v357 = vunpack.c.l.b16 %v90
    %v358 = vunpack.c.h.b16 %v90
    %v359 = vunpack.c.l.b16 %v91
    %v360 = vunpack.c.h.b16 %v91
    %v361 = vunpack.c.l.b16 %v92
    %v362 = vunpack.c.h.b16 %v92
    %v363 = vunpack.c.l.b16 %v93
    %v364 = vunpack.c.h.b16 %v93
    %v365 = vunpack.c.l.b16 %v94
    %v366 = vunpack.c.h.b16 %v94
    %v367 = vunpack.c.l.b16 %v95
    %v368 = vunpack.c.h.b16 %v95
    %v369 = vunpack.c.l.b16 %v96
    %v370 = vunpack.c.h.b16 %v96
    %v371 = vunpack.c.l.b16 %v97
    %v372 = vunpack.c.h.b16 %v97
    %v373 = vunpack.c.l.b16 %v98
    %v374 = vunpack.c.h.b16 %v98
    %v375 = vunpack.c.l.b16 %v99
    %v376 = vunpack.c.h.b16 %v99
    %v377 = vunpack.c.l.b16 %v100
    %v378 = vunpack.c.h.b16 %v100
    %v379 = vunpack.c.l.b16 %v101
    %v380 = vunpack.c.h.b16 %v101
    %v381 = vunpack.c.l.b16 %v102
    %v382 = vunpack.c.h.b16 %v102
    %v383 = vunpack.c.l.b16 %v103
    %v384 = vunpack.c.h.b16 %v103
    %v385 = vunpack.c.l.b16 %v104
    %v386 = vunpack.c.h.b16 %v104
    %v387 = vunpack.c.l.b16 %v105
    %v388 = vunpack.c.h.b16 %v105
    %v389 = vunpack.c.l.b16 %v106
    %v390 = vunpack.c.h.b16 %v106
    %v391 = vunpack.c.l.b16 %v107
    %v392 = vunpack.c.h.b16 %v107
    %v393 = vunpack.c.l.b16 %v108
    %v394 = vunpack.c.h.b16 %v108
    %v395 = vunpack.c.l.b16 %v109
    %v396 = vunpack.c.h.b16 %v109
    %v397 = vunpack.c.l.b16 %v110
    %v398 = vunpack.c.h.b16 %v110
    %v399 = vunpack.c.l.b16 %v111
    %v400 = vunpack.c.h.b16 %v111
    %v401 = vunpack.c.l.b16 %v112
    %v402 = vunpack.c.h.b16 %v112
    %v403 = vunpack.c.l.b16 %v113
    %v404 = vunpack.c.h.b16 %v113
    %v405 = vunpack.c.l.b16 %v114
    %v406 = vunpack.c.h.b16 %v114
    %v407 = vunpack.c.l.b16 %v115
    %v408 = vunpack.c.h.b16 %v115
    %v409 = vunpack.c.l.b16 %v116
    %v410 = vunpack.c.h.b16 %v116
    %v411 = vunpack.c.l.b16 %v117
    %v412 = vunpack.c.h.b16 %v117
    %v413 = vunpack.c.l.b16 %v118
    %v414 = vunpack.c.h.b16 %v118
    %v415 = vunpack.c.l.b16 %v119
    %v416 = vunpack.c.h.b16 %v119
    %v417 = vunpack.c.l.b16 %v120
    %v418 = vunpack.c.h.b16 %v120
    %v419 = vunpack.c.l.b16 %v121
    %v420 = vunpack.c.h.b16 %v121
    %v421 = vunpack.c.l.b16 %v122
    %v422 = vunpack.c.h.b16 %v122
    %v423 = vunpack.c.l.b16 %v123
    %v424 = vunpack.c.h.b16 %v123
    %v425 = vunpack.c.l.b16 %v124
    %v426 = vunpack.c.h.b16 %v124
    %v427 = vunpack.c.l.b16 %v125
    %v428 = vunpack.c.h.b16 %v125
    %v429 = vunpack.c.l.b16 %v126
    %v430 = vunpack.c.h.b16 %v126
    %v431 = vunpack.c.l.b16 %v127
    %v432 = vunpack.c.h.b16 %v127
    %v433 = vunpack.c.l.b16 %v128
    %v434 = vunpack.c.h.b16 %v128
    %v435 = vunpack.c.l.b16 %v129
    %v436 = vunpack.c.h.b16 %v129
    %v437 = vunpack.c.l.b16 %v130
    %v438 = vunpack.c.h.b16 %v130
    %v439 = vunpack.c.l.b16 %v131
    %v440 = vunpack.c.h.b16 %v131
    %v441 = vunpack.c.l.b16 %v132
    %v442 = vunpack.c.h.b16 %v132
    %v443 = vunpack.c.l.b16 %v133
    %v444 = vunpack.c.h.b16 %v133
    %v445 = vunpack.c.l.b16 %v134
    %v446 = vunpack.c.h.b16 %v134
    %v447 = vunpack.c.l.b16 %v135
    %v448 = vunpack.c.h.b16 %v135
    %v449 = vunpack.c.l.b16 %v136
    %v450 = vunpack.c.h.b16 %v136
    %v451 = vunpack.c.l.b16 %v137
    %v452 = vunpack.c.h.b16 %v137
    %v453 = vunpack.c.l.b16 %v138
    %v454 = vunpack.c.h.b16 %v138
    %v455 = vunpack.c.l.b16 %v139
    %v456 = vunpack.c.h.b16 %v139
    %v457 = vunpack.c.l.b16 %v140
    %v458 = vunpack.c.h.b16 %v140
    %v459 = vunpack.c.l.b16 %v141
    %v460 = vunpack.c.h.b16 %v141
    %v461 = vunpack.c.l.b16 %v142
    %v462 = vunpack.c.h.b16 %v142
    %v463 = vunpack.c.l.b16 %v143
    %v464 = vunpack.c.h.b16 %v143
    %v465 = vunpack.c.l.b16 %v144
    %v466 = vunpack.c.h.b16 %v144
    %v467 = vunpack.c.l.b16 %v145
    %v468 = vunpack.c.h.b16 %v145
    %v469 = vunpack.c.l.b16 %v146
    %v470 = vunpack.c.h.b16 %v146
    %v471 = vunpack.c.l.b16 %v147
    %v472 = vunpack.c.h.b16 %v147
    %v473 = vunpack.c.l.b16 %v148
    %v474 = vunpack.c.h.b16 %v148
    %v475 = vunpack.c.l.b16 %v149
    %v476 = vunpack.c.h.b16 %v149
    %v477 = vunpack.c.l.b16 %v150
    %v478 = vunpack.c.h.b16 %v150
    %v479 = vunpack.c.l.b16 %v151
    %v480 = vunpack.c.h.b16 %v151
    %v481 = vunpack.c.l.b16 %v152
    %v482 = vunpack.c.h.b16 %v152
    %v483 = vpack.c.b16 %v289, %v287
    %v484 = vpack.c.b16 %v290, %v288
    %v485 = vpack.c.b16 %v293, %v291
    %v486 = vpack.c.b16 %v294, %v292
    %v487 = vpack.c.b16 %v297, %v295
    %v488 = vpack.c.b16 %v298, %v296
    %v489 = vpack.c.b16 %v301, %v299
    %v490 = vpack.c.b16 %v302, %v300
    %v491 = vpack.c.b16 %v305, %v303
    %v492 = vpack.c.b16 %v306, %v304
    %v493 = vpack.c.b16 %v309, %v307
    %v494 = vpack.c.b16 %v310, %v308
    %v495 = vpack.c.b16 %v313, %v311
    %v496 = vpack.c.b16 %v314, %v312
    %v497 = vpack.c.b16 %v317, %v315
    %v498 = vpack.c.b16 %v318, %v316
    %v499 = vpack.c.b16 %v321, %v319
    %v500 = vpack.c.b16 %v322, %v320
    %v501 = vpack.c.b16 %v325, %v323
    %v502 = vpack.c.b16 %v326, %v324
    %v503 = vpack.c.b16 %v329, %v327
    %v504 = vpack.c.b16 %v330, %v328
    %v505 = vpack.c.b16 %v333, %v331
    %v506 = vpack.c.b16 %v334, %v332
    %v507 = vpack.c.b16 %v337, %v335
    %v508 = vpack.c.b16 %v338, %v336
    %v509 = vpack.c.b16 %v341, %v339
    %v510 = vpack.c.b16 %v342, %v340
    %v511 = vpack.c.b16 %v345, %v343
    %v512 = vpack.c.b16 %v346, %v344
    %v513 = vpack.c.b16 %v349, %v347
    %v514 = vpack.c.b16 %v350, %v348
    %v515 = vpack.c.b16 %v353, %v351
    %v516 = vpack.c.b16 %v354, %v352
    %v517 = vpack.c.b16 %v357, %v355
    %v518 = vpack.c.b16 %v358, %v356
    %v519 = vpack.c.b16 %v361, %v359
    %v520 = vpack.c.b16 %v362, %v360
    %v521 = vpack.c.b16 %v365, %v363
    %v522 = vpack.c.b16 %v366, %v364
    %v523 = vpack.c.b16 %v369, %v367
    %v524 = vpack.c.b16 %v370, %v368
    %v525 = vpack.c.b16 %v373, %v371
    %v526 = vpack.c.b16 %v374, %v372
    %v527 = vpack.c.b16 %v377, %v375
    %v528 = vpack.c.b16 %v378, %v376
    %v529 = vpack.c.b16 %v381, %v379
    %v530 = vpack.c.b16 %v382, %v380
    %v531 = vpack.c.b16 %v385, %v383
    %v532 = vpack.c.b16 %v386, %v384
    %v533 = vpack.c.b16 %v389, %v387
    %v534 = vpack.c.b16 %v390, %v388
    %v535 = vpack.c.b16 %v393, %v391
    %v536 = vpack.c.b16 %v394, %v392
    %v537 = vpack.c.b16 %v397, %v395
    %v538 = vpack.c.b16 %v398, %v396
    %v539 = vpack.c.b16 %v401, %v399
    %v540 = vpack.c.b16 %v402, %v400
    %v541 = vpack.c.b16 %v405, %v403
    %v542 = vpack.c.b16 %v406, %v404
    %v543 = vpack.c.b16 %v409, %v407
    %v544 = vpack.c.b16 %v410, %v408
    %v545 = vpack.c.b16 %v413, %v411
    %v546 = vpack.c.b16 %v414, %v412
    %v547 = vpack.c.b16 %v417, %v415
    %v548 = vpack.c.b16 %v418, %v416
    %v549 = vpack.c.b16 %v421, %v419
    %v550 = vpack.c.b16 %v422, %v420
    %v551 = vpack.c.b16 %v425, %v423
    %v552 = vpack.c.b16 %v426, %v424
    %v553 = vpack.c.b16 %v429, %v427
    %v554 = vpack.c.b16 %v430, %v428
    %v555 = vpack.c.b16 %v433, %v431
    %v556 = vpack.c.b16 %v434, %v432
    %v557 = vpack.c.b16 %v437, %v435
    %v558 = vpack.c.b16 %v438, %v436
    %v559 = vpack.c.b16 %v441, %v439
    %v560 = vpack.c.b16 %v442, %v440
    %v561 = vpack.c.b16 %v445, %v443
    %v562 = vpack.c.b16 %v446, %v444
    %v563 = vpack.c.b16 %v449, %v447
    %v564 = vpack.c.b16 %v450, %v448
    %v565 = vpack.c.b16 %v453, %v451
    %v566 = vpack.c.b16 %v454, %v452
    %v567 = vpack.c.b16 %v457, %v455
    %v568 = vpack.c.b16 %v458, %v456
    %v569 = vpack.c.b16 %v461, %v459
    %v570 = vpack.c.b16 %v462, %v460
    %v571 = vpack.c.b16 %v465, %v463
    %v572 = vpack.c.b16 %v466, %v464
    %v573 = vpack.c.b16 %v469, %v467
    %v574 = vpack.c.b16 %v470, %v468
    %v575 = vpack.c.b16 %v473, %v471
    %v576 = vpack.c.b16 %v474, %v472
    %v577 = vpack.c.b16 %v477, %v475
    %v578 = vpack.c.b16 %v478, %v476
    %v579 = vpack.c.b16 %v481, %v479
    %v580 = vpack.c.b16 %v482, %v480
    %vm679 = vcmask 130048
    %v681 = vsel %vm679, %v182, 0
    %683 = vmatprep.subr.bf16.mxu0 %v484
    %684 = vmatpush1.bf16.msra.mxu0 %v483
    %685 = vmatprep.subr.bf16.mxu0 %v486
    %686 = vmatpush1.bf16.msra.mxu0 %v485
    %687 = vmatprep.subr.bf16.mxu0 %v488
    %688 = vmatpush1.bf16.msra.mxu0 %v487
    %689 = vmatprep.subr.bf16.mxu0 %v490
    %690 = vmatpush1.bf16.msra.mxu0 %v489
    %691 = vmatprep.subr.bf16.mxu0 %v492
    %692 = vmatpush1.bf16.msra.mxu0 %v491
    %693 = vmatprep.subr.bf16.mxu0 %v494
    %694 = vmatpush1.bf16.msra.mxu0 %v493
    %695 = vmatprep.subr.bf16.mxu0 %v496
    %696 = vmatpush1.bf16.msra.mxu0 %v495
    %697 = vmatprep.subr.bf16.mxu0 %v498
    %698 = vmatpush1.bf16.msra.mxu0 %v497
    %699 = vmatprep.subr.bf16.mxu0 %v500
    %700 = vmatpush1.bf16.msra.mxu0 %v499
    %701 = vmatprep.subr.bf16.mxu0 %v502
    %702 = vmatpush1.bf16.msra.mxu0 %v501
    %703 = vmatprep.subr.bf16.mxu0 %v504
    %704 = vmatpush1.bf16.msra.mxu0 %v503
    %705 = vmatprep.subr.bf16.mxu0 %v506
    %706 = vmatpush1.bf16.msra.mxu0 %v505
    %707 = vmatprep.subr.bf16.mxu0 %v508
    %708 = vmatpush1.bf16.msra.mxu0 %v507
    %709 = vmatprep.subr.bf16.mxu0 %v510
    %710 = vmatpush1.bf16.msra.mxu0 %v509
    %711 = vmatprep.subr.bf16.mxu0 %v512
    %712 = vmatpush1.bf16.msra.mxu0 %v511
    %713 = vmatprep.subr.bf16.mxu0 %v514
    %714 = vmatpush1.bf16.msra.mxu0 %v513
    %715 = vmatprep.mubr.bf16.mxu0 %v177
    %716 = vmatmul.mubr.bf16.gmra.mrb[0].mxu0 %v176
    %v717 = vpop.f32.mrb[0].mxu0
    %v718 = vadd.f32 %v158, %v717
    %v719 = vpop.f32.mrb[0].mxu0
    %v720 = vadd.f32 %v162, %v719
    %v721 = vpop.f32.mrb[0].mxu0
    %v722 = vpop.f32.mrb[0].mxu0
    %723 = vdwg.mxu0
    %724 = vmatprep.subr.bf16.mxu0 %v516
    %725 = vmatpush1.bf16.msra.mxu0 %v515
    %726 = vmatprep.subr.bf16.mxu0 %v518
    %727 = vmatpush1.bf16.msra.mxu0 %v517
    %728 = vmatprep.subr.bf16.mxu0 %v520
    %729 = vmatpush1.bf16.msra.mxu0 %v519
    %730 = vmatprep.subr.bf16.mxu0 %v522
    %731 = vmatpush1.bf16.msra.mxu0 %v521
    %732 = vmatprep.subr.bf16.mxu0 %v524
    %733 = vmatpush1.bf16.msra.mxu0 %v523
    %734 = vmatprep.subr.bf16.mxu0 %v526
    %735 = vmatpush1.bf16.msra.mxu0 %v525
    %736 = vmatprep.subr.bf16.mxu0 %v528
    %737 = vmatpush1.bf16.msra.mxu0 %v527
    %738 = vmatprep.subr.bf16.mxu0 %v530
    %739 = vmatpush1.bf16.msra.mxu0 %v529
    %740 = vmatprep.subr.bf16.mxu0 %v532
    %741 = vmatpush1.bf16.msra.mxu0 %v531
    %742 = vmatprep.subr.bf16.mxu0 %v534
    %743 = vmatpush1.bf16.msra.mxu0 %v533
    %744 = vmatprep.subr.bf16.mxu0 %v536
    %745 = vmatpush1.bf16.msra.mxu0 %v535
    %746 = vmatprep.subr.bf16.mxu0 %v538
    %747 = vmatpush1.bf16.msra.mxu0 %v537
    %748 = vmatprep.subr.bf16.mxu0 %v540
    %749 = vmatpush1.bf16.msra.mxu0 %v539
    %750 = vmatprep.subr.bf16.mxu0 %v542
    %751 = vmatpush1.bf16.msra.mxu0 %v541
    %752 = vmatprep.subr.bf16.mxu0 %v544
    %753 = vmatpush1.bf16.msra.mxu0 %v543
    %754 = vmatprep.subr.bf16.mxu0 %v546
    %755 = vmatpush1.bf16.msra.mxu0 %v545
    %756 = vmatprep.mubr.bf16.mxu0 %v179
    %757 = vmatmul.mubr.bf16.gmra.mrb[0].mxu0 %v178
    %v758 = vpop.f32.mrb[0].mxu0
    %v759 = vadd.f32 %v718, %v758
    %v760 = vpop.f32.mrb[0].mxu0
    %v761 = vadd.f32 %v720, %v760
    %v762 = vpop.f32.mrb[0].mxu0
    %v763 = vpop.f32.mrb[0].mxu0
    %764 = vdwg.mxu0
    %765 = vmatprep.subr.bf16.mxu0 %v548
    %766 = vmatpush1.bf16.msra.mxu0 %v547
    %767 = vmatprep.subr.bf16.mxu0 %v550
    %768 = vmatpush1.bf16.msra.mxu0 %v549
    %769 = vmatprep.subr.bf16.mxu0 %v552
    %770 = vmatpush1.bf16.msra.mxu0 %v551
    %771 = vmatprep.subr.bf16.mxu0 %v554
    %772 = vmatpush1.bf16.msra.mxu0 %v553
    %773 = vmatprep.subr.bf16.mxu0 %v556
    %774 = vmatpush1.bf16.msra.mxu0 %v555
    %775 = vmatprep.subr.bf16.mxu0 %v558
    %776 = vmatpush1.bf16.msra.mxu0 %v557
    %777 = vmatprep.subr.bf16.mxu0 %v560
    %778 = vmatpush1.bf16.msra.mxu0 %v559
    %779 = vmatprep.subr.bf16.mxu0 %v562
    %780 = vmatpush1.bf16.msra.mxu0 %v561
    %781 = vmatprep.subr.bf16.mxu0 %v564
    %782 = vmatpush1.bf16.msra.mxu0 %v563
    %783 = vmatprep.subr.bf16.mxu0 %v566
    %784 = vmatpush1.bf16.msra.mxu0 %v565
    %785 = vmatprep.subr.bf16.mxu0 %v568
    %786 = vmatpush1.bf16.msra.mxu0 %v567
    %787 = vmatprep.subr.bf16.mxu0 %v570
    %788 = vmatpush1.bf16.msra.mxu0 %v569
    %789 = vmatprep.subr.bf16.mxu0 %v572
    %790 = vmatpush1.bf16.msra.mxu0 %v571
    %791 = vmatprep.subr.bf16.mxu0 %v574
    %792 = vmatpush1.bf16.msra.mxu0 %v573
    %793 = vmatprep.subr.bf16.mxu0 %v576
    %794 = vmatpush1.bf16.msra.mxu0 %v575
    %795 = vmatprep.subr.bf16.mxu0 %v578
    %796 = vmatpush1.bf16.msra.mxu0 %v577
    %797 = vmatprep.mubr.bf16.mxu0 %v181
    %798 = vmatmul.mubr.bf16.gmra.mrb[0].mxu0 %v180
    %v799 = vpop.f32.mrb[0].mxu0
    %v800 = vadd.f32 %v759, %v799
    %v801 = vpop.f32.mrb[0].mxu0
    %v802 = vadd.f32 %v761, %v801
    %v803 = vpop.f32.mrb[0].mxu0
    %v804 = vpop.f32.mrb[0].mxu0
    %805 = vdwg.mxu0
    %806 = vmatprep.subr.bf16.mxu0 %v580
    %807 = vmatpush1.bf16.msra.mxu0 %v579
    %808 = vmatprep.subr.bf16.mxu0 0
    %809 = vmatpush1.bf16.msra.mxu0 0
    %810 = vmatprep.subr.bf16.mxu0 0
    %811 = vmatpush1.bf16.msra.mxu0 0
    %812 = vmatprep.subr.bf16.mxu0 0
    %813 = vmatpush1.bf16.msra.mxu0 0
    %814 = vmatprep.subr.bf16.mxu0 0
    %815 = vmatpush1.bf16.msra.mxu0 0
    %816 = vmatprep.subr.bf16.mxu0 0
    %817 = vmatpush1.bf16.msra.mxu0 0
    %818 = vmatprep.subr.bf16.mxu0 0
    %819 = vmatpush1.bf16.msra.mxu0 0
    %820 = vmatprep.subr.bf16.mxu0 0
    %821 = vmatpush1.bf16.msra.mxu0 0
    %822 = vmatprep.subr.bf16.mxu0 0
    %823 = vmatpush1.bf16.msra.mxu0 0
    %824 = vmatprep.subr.bf16.mxu0 0
    %825 = vmatpush1.bf16.msra.mxu0 0
    %826 = vmatprep.subr.bf16.mxu0 0
    %827 = vmatpush1.bf16.msra.mxu0 0
    %828 = vmatprep.subr.bf16.mxu0 0
    %829 = vmatpush1.bf16.msra.mxu0 0
    %830 = vmatprep.subr.bf16.mxu0 0
    %831 = vmatpush1.bf16.msra.mxu0 0
    %832 = vmatprep.subr.bf16.mxu0 0
    %833 = vmatpush1.bf16.msra.mxu0 0
    %834 = vmatprep.subr.bf16.mxu0 0
    %835 = vmatpush1.bf16.msra.mxu0 0
    %836 = vmatprep.subr.bf16.mxu0 0
    %837 = vmatpush1.bf16.msra.mxu0 0
    %838 = vmatprep.mubr.bf16.mxu0 0
    %839 = vmatmul.mubr.bf16.gmra.mrb[0].mxu0 %v681
    %v840 = vpop.f32.mrb[0].mxu0
    %v841 = vadd.f32 %v800, %v840
    %v842 = vpop.f32.mrb[0].mxu0
    %v843 = vadd.f32 %v802, %v842
    %v844 = vpop.f32.mrb[0].mxu0
    %v845 = vpop.f32.mrb[0].mxu0
    %846 = vdwg.mxu0
    %v847 = vmax.f32 %v841, 0.0
    %v848 = vmax.f32 %v843, 0.0
    %v849 = vpack.c.bf16 %v847, %v847
    %v850 = vpack.c.bf16 %v848, %v848
    %v851 = vld [vmem:[%s4] sm:$0xff]
    %v852 = vld [vmem:[%s4 + $0x8] sm:$0xff]
    %v853 = vld [vmem:[%s4 + $0x10] sm:$0xff]
    %v854 = vld [vmem:[%s4 + $0x18] sm:$0xff]
    %v855 = vld [vmem:[%s4 + $0x20] sm:$0xff]
    %v856 = vld [vmem:[%s4 + $0x28] sm:$0xff]
    %v857 = vld [vmem:[%s4 + $0x30] sm:$0xff]
    %v858 = vld [vmem:[%s4 + $0x38] sm:$0xff]
    %v859 = vld [vmem:[%s4 + $0x40] sm:$0xff]
    %v860 = vld [vmem:[%s4 + $0x48] sm:$0xff]
    %v861 = vld [vmem:[%s4 + $0x50] sm:$0xff]
    %v862 = vld [vmem:[%s4 + $0x58] sm:$0xff]
    %v863 = vld [vmem:[%s4 + $0x60] sm:$0xff]
    %v864 = vld [vmem:[%s4 + $0x68] sm:$0xff]
    %v865 = vld [vmem:[%s4 + $0x70] sm:$0xff]
    %v866 = vld [vmem:[%s4 + $0x78] sm:$0xff]
    %v867 = vld [vmem:[%s4 + $0x80] sm:$0xff]
    %v868 = vld [vmem:[%s4 + $0x88] sm:$0xff]
    %v869 = vld [vmem:[%s4 + $0x90] sm:$0xff]
    %v870 = vld [vmem:[%s4 + $0x98] sm:$0xff]
    %v871 = vld [vmem:[%s4 + $0xa0] sm:$0xff]
    %v872 = vld [vmem:[%s4 + $0xa8] sm:$0xff]
    %v873 = vld [vmem:[%s4 + $0xb0] sm:$0xff]
    %v874 = vld [vmem:[%s4 + $0xb8] sm:$0xff]
    %v875 = vld [vmem:[%s4 + $0xc0] sm:$0xff]
    %v876 = vld [vmem:[%s5] sm:$0x3]
    %v878 = vlaneseq
    %v879 = vshrl.u32 %v878, 7
    %v880 = vsub.s32 0, %v879
    %v881 = vrot.slane %v876, %v880
    %v882 = vlaneseq
    %v883 = vshrl.u32 %v882, 7
    %v884 = vsub.s32 1, %v883
    %v885 = vrot.slane %v876, %v884
    %v913 = vunpack.c.l.b16 %v851
    %v914 = vunpack.c.h.b16 %v851
    %v915 = vunpack.c.l.b16 %v852
    %v916 = vunpack.c.h.b16 %v852
    %v917 = vunpack.c.l.b16 %v853
    %v918 = vunpack.c.h.b16 %v853
    %v919 = vunpack.c.l.b16 %v854
    %v920 = vunpack.c.h.b16 %v854
    %v921 = vunpack.c.l.b16 %v855
    %v922 = vunpack.c.h.b16 %v855
    %v923 = vunpack.c.l.b16 %v856
    %v924 = vunpack.c.h.b16 %v856
    %v925 = vunpack.c.l.b16 %v857
    %v926 = vunpack.c.h.b16 %v857
    %v927 = vunpack.c.l.b16 %v858
    %v928 = vunpack.c.h.b16 %v858
    %v929 = vunpack.c.l.b16 %v859
    %v930 = vunpack.c.h.b16 %v859
    %v931 = vunpack.c.l.b16 %v860
    %v932 = vunpack.c.h.b16 %v860
    %v933 = vunpack.c.l.b16 %v861
    %v934 = vunpack.c.h.b16 %v861
    %v935 = vunpack.c.l.b16 %v862
    %v936 = vunpack.c.h.b16 %v862
    %v937 = vunpack.c.l.b16 %v863
    %v938 = vunpack.c.h.b16 %v863
    %v939 = vunpack.c.l.b16 %v864
    %v940 = vunpack.c.h.b16 %v864
    %v941 = vunpack.c.l.b16 %v865
    %v942 = vunpack.c.h.b16 %v865
    %v943 = vunpack.c.l.b16 %v866
    %v944 = vunpack.c.h.b16 %v866
    %v945 = vunpack.c.l.b16 %v867
    %v946 = vunpack.c.h.b16 %v867
    %v947 = vunpack.c.l.b16 %v868
    %v948 = vunpack.c.h.b16 %v868
    %v949 = vunpack.c.l.b16 %v869
    %v950 = vunpack.c.h.b16 %v869
    %v951 = vunpack.c.l.b16 %v870
    %v952 = vunpack.c.h.b16 %v870
    %v953 = vunpack.c.l.b16 %v871
    %v954 = vunpack.c.h.b16 %v871
    %v955 = vunpack.c.l.b16 %v872
    %v956 = vunpack.c.h.b16 %v872
    %v957 = vunpack.c.l.b16 %v873
    %v958 = vunpack.c.h.b16 %v873
    %v959 = vunpack.c.l.b16 %v874
    %v960 = vunpack.c.h.b16 %v874
    %v961 = vunpack.c.l.b16 %v875
    %v962 = vunpack.c.h.b16 %v875
    %v963 = vpack.c.b16 %v915, %v913
    %v964 = vpack.c.b16 %v916, %v914
    %v965 = vpack.c.b16 %v919, %v917
    %v966 = vpack.c.b16 %v920, %v918
    %v967 = vpack.c.b16 %v923, %v921
    %v968 = vpack.c.b16 %v924, %v922
    %v969 = vpack.c.b16 %v927, %v925
    %v970 = vpack.c.b16 %v928, %v926
    %v971 = vpack.c.b16 %v931, %v929
    %v972 = vpack.c.b16 %v932, %v930
    %v973 = vpack.c.b16 %v935, %v933
    %v974 = vpack.c.b16 %v936, %v934
    %v975 = vpack.c.b16 %v939, %v937
    %v976 = vpack.c.b16 %v940, %v938
    %v977 = vpack.c.b16 %v943, %v941
    %v978 = vpack.c.b16 %v944, %v942
    %v979 = vpack.c.b16 %v947, %v945
    %v980 = vpack.c.b16 %v948, %v946
    %v981 = vpack.c.b16 %v951, %v949
    %v982 = vpack.c.b16 %v952, %v950
    %v983 = vpack.c.b16 %v955, %v953
    %v984 = vpack.c.b16 %v956, %v954
    %v985 = vpack.c.b16 %v959, %v957
    %v986 = vpack.c.b16 %v960, %v958
    %v987 = vpack.c.b16 %v961, %v961
    %v988 = vpack.c.b16 %v962, %v962
    %vm1013 = vcmask 588800
    %v1015 = vsel %vm1013, %v850, 0
    %vm1017 = vcmask 1043456
    %v1019 = vsel %vm1017, %v987, 0
    %v1022 = vsel %vm1017, %v988, 0
    %1024 = vmatprep.subr.bf16.mxu0 %v964
    %1025 = vmatpush1.bf16.msra.mxu0 %v963
    %1026 = vmatprep.subr.bf16.mxu0 %v966
    %1027 = vmatpush1.bf16.msra.mxu0 %v965
    %1028 = vmatprep.subr.bf16.mxu0 %v968
    %1029 = vmatpush1.bf16.msra.mxu0 %v967
    %1030 = vmatprep.subr.bf16.mxu0 %v970
    %1031 = vmatpush1.bf16.msra.mxu0 %v969
    %1032 = vmatprep.subr.bf16.mxu0 %v972
    %1033 = vmatpush1.bf16.msra.mxu0 %v971
    %1034 = vmatprep.subr.bf16.mxu0 %v974
    %1035 = vmatpush1.bf16.msra.mxu0 %v973
    %1036 = vmatprep.subr.bf16.mxu0 %v976
    %1037 = vmatpush1.bf16.msra.mxu0 %v975
    %1038 = vmatprep.subr.bf16.mxu0 %v978
    %1039 = vmatpush1.bf16.msra.mxu0 %v977
    %1040 = vmatprep.subr.bf16.mxu0 %v980
    %1041 = vmatpush1.bf16.msra.mxu0 %v979
    %1042 = vmatprep.subr.bf16.mxu0 %v982
    %1043 = vmatpush1.bf16.msra.mxu0 %v981
    %1044 = vmatprep.subr.bf16.mxu0 %v984
    %1045 = vmatpush1.bf16.msra.mxu0 %v983
    %1046 = vmatprep.subr.bf16.mxu0 %v986
    %1047 = vmatpush1.bf16.msra.mxu0 %v985
    %1048 = vmatprep.subr.bf16.mxu0 %v1022
    %1049 = vmatpush1.bf16.msra.mxu0 %v1019
    %1050 = vmatprep.subr.bf16.mxu0 0
    %1051 = vmatpush1.bf16.msra.mxu0 0
    %1052 = vmatprep.subr.bf16.mxu0 0
    %1053 = vmatpush1.bf16.msra.mxu0 0
    %1054 = vmatprep.subr.bf16.mxu0 0
    %1055 = vmatpush1.bf16.msra.mxu0 0
    %1056 = vmatprep.mubr.bf16.mxu0 %v1015
    %1057 = vmatmul.mubr.bf16.gmra.mrb[0].mxu0 %v849
    %v1058 = vpop.f32.mrb[0].mxu0
    %v1059 = vadd.f32 %v881, %v1058
    %v1060 = vpop.f32.mrb[0].mxu0
    %v1061 = vadd.f32 %v885, %v1060
    %v1062 = vpop.f32.mrb[0].mxu0
    %v1063 = vpop.f32.mrb[0].mxu0
    %1064 = vdwg.mxu0
    %v1065 = vmax.f32 %v1059, 0.0
    %v1066 = vmax.f32 %v1061, 0.0
    %v1067 = vpack.c.bf16 %v1065, %v1065
    %v1068 = vpack.c.bf16 %v1066, %v1066
    %v1069 = vld [vmem:[%s6] sm:$0xf]
    %v1070 = vld [vmem:[%s6 + $0x4] sm:$0xf]
    %v1071 = vld [vmem:[%s6 + $0x8] sm:$0xf]
    %v1072 = vld [vmem:[%s6 + $0xc] sm:$0xf]
    %v1073 = vld [vmem:[%s6 + $0x10] sm:$0xf]
    %v1074 = vld [vmem:[%s6 + $0x14] sm:$0xf]
    %v1075 = vld [vmem:[%s6 + $0x18] sm:$0xf]
    %v1076 = vld [vmem:[%s6 + $0x1c] sm:$0xf]
    %v1077 = vld [vmem:[%s6 + $0x20] sm:$0xf]
    %v1078 = vld [vmem:[%s6 + $0x24] sm:$0xf]
    %v1079 = vld [vmem:[%s6 + $0x28] sm:$0xf]
    %v1080 = vld [vmem:[%s6 + $0x2c] sm:$0xf]
    %v1081 = vld [vmem:[%s6 + $0x30] sm:$0xf]
    %v1082 = vld [vmem:[%s6 + $0x34] sm:$0xf]
    %v1083 = vld [vmem:[%s6 + $0x38] sm:$0xf]
    %v1084 = vld [vmem:[%s6 + $0x3c] sm:$0xf]
    %v1085 = vld [vmem:[%s6 + $0x40] sm:$0xf]
    %v1086 = vld [vmem:[%s6 + $0x44] sm:$0xf]
    %v1087 = vld [vmem:[%s6 + $0x48] sm:$0xf]
    %v1088 = vld [vmem:[%s6 + $0x4c] sm:$0xf]
    %v1089 = vld [vmem:[%s6 + $0x50] sm:$0xf]
    %v1090 = vld [vmem:[%s6 + $0x54] sm:$0xf]
    %v1091 = vld [vmem:[%s6 + $0x58] sm:$0xf]
    %v1092 = vld [vmem:[%s6 + $0x5c] sm:$0xf]
    %v1093 = vld [vmem:[%s6 + $0x60] sm:$0xf]
    %v1094 = vld [vmem:[%s7] sm:$0x1]
    %v1096 = vlaneseq
    %v1097 = vshrl.u32 %v1096, 7
    %v1098 = vsub.s32 0, %v1097
    %v1099 = vrot.slane %v1094, %v1098
    %v1126 = vunpack.c.l.b16 %v1069
    %v1127 = vunpack.c.l.b16 %v1070
    %v1128 = vunpack.c.l.b16 %v1071
    %v1129 = vunpack.c.l.b16 %v1072
    %v1130 = vunpack.c.l.b16 %v1073
    %v1131 = vunpack.c.l.b16 %v1074
    %v1132 = vunpack.c.l.b16 %v1075
    %v1133 = vunpack.c.l.b16 %v1076
    %v1134 = vunpack.c.l.b16 %v1077
    %v1135 = vunpack.c.l.b16 %v1078
    %v1136 = vunpack.c.l.b16 %v1079
    %v1137 = vunpack.c.l.b16 %v1080
    %v1138 = vunpack.c.l.b16 %v1081
    %v1139 = vunpack.c.l.b16 %v1082
    %v1140 = vunpack.c.l.b16 %v1083
    %v1141 = vunpack.c.l.b16 %v1084
    %v1142 = vunpack.c.l.b16 %v1085
    %v1143 = vunpack.c.l.b16 %v1086
    %v1144 = vunpack.c.l.b16 %v1087
    %v1145 = vunpack.c.l.b16 %v1088
    %v1146 = vunpack.c.l.b16 %v1089
    %v1147 = vunpack.c.l.b16 %v1090
    %v1148 = vunpack.c.l.b16 %v1091
    %v1149 = vunpack.c.l.b16 %v1092
    %v1150 = vunpack.c.l.b16 %v1093
    %v1151 = vpack.c.b16 %v1127, %v1126
    %v1152 = vpack.c.b16 %v1129, %v1128
    %v1153 = vpack.c.b16 %v1131, %v1130
    %v1154 = vpack.c.b16 %v1133, %v1132
    %v1155 = vpack.c.b16 %v1135, %v1134
    %v1156 = vpack.c.b16 %v1137, %v1136
    %v1157 = vpack.c.b16 %v1139, %v1138
    %v1158 = vpack.c.b16 %v1141, %v1140
    %v1159 = vpack.c.b16 %v1143, %v1142
    %v1160 = vpack.c.b16 %v1145, %v1144
    %v1161 = vpack.c.b16 %v1147, %v1146
    %v1162 = vpack.c.b16 %v1149, %v1148
    %v1163 = vpack.c.b16 %v1150, %v1150
    %v1177 = vsel %vm1013, %v1068, 0
    %v1180 = vsel %vm1017, %v1163, 0
    %1182 = vmatprep.subr.bf16.mxu0 0
    %1183 = vmatpush1.bf16.msra.mxu0 %v1151
    %1184 = vmatprep.subr.bf16.mxu0 0
    %1185 = vmatpush1.bf16.msra.mxu0 %v1152
    %1186 = vmatprep.subr.bf16.mxu0 0
    %1187 = vmatpush1.bf16.msra.mxu0 %v1153
    %1188 = vmatprep.subr.bf16.mxu0 0
    %1189 = vmatpush1.bf16.msra.mxu0 %v1154
    %1190 = vmatprep.subr.bf16.mxu0 0
    %1191 = vmatpush1.bf16.msra.mxu0 %v1155
    %1192 = vmatprep.subr.bf16.mxu0 0
    %1193 = vmatpush1.bf16.msra.mxu0 %v1156
    %1194 = vmatprep.subr.bf16.mxu0 0
    %1195 = vmatpush1.bf16.msra.mxu0 %v1157
    %1196 = vmatprep.subr.bf16.mxu0 0
    %1197 = vmatpush1.bf16.msra.mxu0 %v1158
    %1198 = vmatprep.subr.bf16.mxu0 0
    %1199 = vmatpush1.bf16.msra.mxu0 %v1159
    %1200 = vmatprep.subr.bf16.mxu0 0
    %1201 = vmatpush1.bf16.msra.mxu0 %v1160
    %1202 = vmatprep.subr.bf16.mxu0 0
    %1203 = vmatpush1.bf16.msra.mxu0 %v1161
    %1204 = vmatprep.subr.bf16.mxu0 0
    %1205 = vmatpush1.bf16.msra.mxu0 %v1162
    %1206 = vmatprep.subr.bf16.mxu0 0
    %1207 = vmatpush1.bf16.msra.mxu0 %v1180
    %1208 = vmatprep.subr.bf16.mxu0 0
    %1209 = vmatpush1.bf16.msra.mxu0 0
    %1210 = vmatprep.subr.bf16.mxu0 0
    %1211 = vmatpush1.bf16.msra.mxu0 0
    %1212 = vmatprep.subr.bf16.mxu0 0
    %1213 = vmatpush1.bf16.msra.mxu0 0
    %1214 = vmatprep.mubr.bf16.mxu0 %v1177
    %1215 = vmatmul.mubr.bf16.gmra.mrb[0].mxu0 %v1067
    %v1216 = vpop.f32.mrb[0].mxu0
    %v1217 = vadd.f32 %v1099, %v1216
    %v1218 = vpop.f32.mrb[0].mxu0
    %v1219 = vpop.f32.mrb[0].mxu0
    %v1220 = vpop.f32.mrb[0].mxu0
    %1221 = vdwg.mxu0
    %v1222 = vmul.f32 %v1217, 0.5
    %v1223 = vmul.f32 %v1222, 1.442695
    %v1224 = vpow.pop %v1223
    %v1225 = vld [vmem:[%s1] sm:$0x1]
    %v1227 = vlaneseq
    %v1228 = vshrl.u32 %v1227, 7
    %v1229 = vsub.s32 0, %v1228
    %v1230 = vrot.slane %v1225, %v1229
    %1233 = vrot.lane.b32.xlu0 %v1224, 126
    %v1234 = vpop.permute.xlu0 %1233
    %v1236 = vmul.f32 %v1230, %v1234
    %v1237 = vadd.f32 %v1236, %v1217
    %v1238 = vld [vmem:[%s9] sm:$0x3]
    %v1239 = vld [vmem:[%s8] ss:$2 sm:$0x3]
    %1241 = vset.pattern.permute.xlu0 0
    %1242 = vperm.xlu0 %1241, %v1237
    %v1243 = vpop.permute.xlu0 %1242
    %v1246 = vlaneseq
    %v1247 = vshrl.u32 %v1246, 7
    %v1248 = vsub.s32 0, %v1247
    %v1249 = vrot.slane %v1239, %v1248
    %v1250 = vlaneseq
    %v1251 = vshrl.u32 %v1250, 7
    %v1252 = vsub.s32 1, %v1251
    %v1253 = vrot.slane %v1239, %v1252
    %v1256 = vmul.f32 %v1243, %v1249
    %v1257 = vmul.f32 %v1243, %v1253
    %v1259 = vlaneseq
    %v1260 = vshrl.u32 %v1259, 7
    %v1261 = vsub.s32 0, %v1260
    %v1262 = vrot.slane %v1238, %v1261
    %v1263 = vlaneseq
    %v1264 = vshrl.u32 %v1263, 7
    %v1265 = vsub.s32 1, %v1264
    %v1266 = vrot.slane %v1238, %v1265
    %v1269 = vadd.f32 %v1262, %v1256
    %v1270 = vadd.f32 %v1266, %v1257
    %s1271 = scalar_lea.vmem %s8, 1
    %v1272 = vld [vmem:[%s1271] ss:$2 sm:$0x3]
    %1273 = vset.pattern.permute.xlu0 1
    %1274 = vperm.xlu0 %1273, %v1237
    %v1275 = vpop.permute.xlu0 %1274
    %v1278 = vlaneseq
    %v1279 = vshrl.u32 %v1278, 7
    %v1280 = vsub.s32 0, %v1279
    %v1281 = vrot.slane %v1272, %v1280
    %v1282 = vlaneseq
    %v1283 = vshrl.u32 %v1282, 7
    %v1284 = vsub.s32 1, %v1283
    %v1285 = vrot.slane %v1272, %v1284
    %v1288 = vmul.f32 %v1275, %v1281
    %v1289 = vmul.f32 %v1275, %v1285
    %v1290 = vadd.f32 %v1269, %v1288
    %v1291 = vadd.f32 %v1270, %v1289
    %v1292 = vmax.f32 %v1290, 0.0
    %v1293 = vmax.f32 %v1291, 0.0
    %v1294 = vpack.c.bf16 %v1292, %v1292
    %v1295 = vpack.c.bf16 %v1293, %v1293
    %v1296 = vld [vmem:[%s10] sm:$0xff]
    %v1297 = vld [vmem:[%s10 + $0x8] sm:$0xff]
    %v1298 = vld [vmem:[%s10 + $0x10] sm:$0xff]
    %v1299 = vld [vmem:[%s10 + $0x18] sm:$0xff]
    %v1300 = vld [vmem:[%s10 + $0x20] sm:$0xff]
    %v1301 = vld [vmem:[%s10 + $0x28] sm:$0xff]
    %v1302 = vld [vmem:[%s10 + $0x30] sm:$0xff]
    %v1303 = vld [vmem:[%s10 + $0x38] sm:$0xff]
    %v1304 = vld [vmem:[%s10 + $0x40] sm:$0xff]
    %v1305 = vld [vmem:[%s10 + $0x48] sm:$0xff]
    %v1306 = vld [vmem:[%s10 + $0x50] sm:$0xff]
    %v1307 = vld [vmem:[%s10 + $0x58] sm:$0xff]
    %v1308 = vld [vmem:[%s10 + $0x60] sm:$0xff]
    %v1309 = vld [vmem:[%s10 + $0x68] sm:$0xff]
    %v1310 = vld [vmem:[%s10 + $0x70] sm:$0xff]
    %v1311 = vld [vmem:[%s10 + $0x78] sm:$0xff]
    %v1312 = vld [vmem:[%s10 + $0x80] sm:$0xff]
    %v1313 = vld [vmem:[%s10 + $0x88] sm:$0xff]
    %v1314 = vld [vmem:[%s10 + $0x90] sm:$0xff]
    %v1315 = vld [vmem:[%s10 + $0x98] sm:$0xff]
    %v1316 = vld [vmem:[%s10 + $0xa0] sm:$0xff]
    %v1317 = vld [vmem:[%s10 + $0xa8] sm:$0xff]
    %v1318 = vld [vmem:[%s10 + $0xb0] sm:$0xff]
    %v1319 = vld [vmem:[%s10 + $0xb8] sm:$0xff]
    %v1320 = vld [vmem:[%s10 + $0xc0] sm:$0xff]
    %v1321 = vld [vmem:[%s11] sm:$0x3]
    %v1323 = vlaneseq
    %v1324 = vshrl.u32 %v1323, 7
    %v1325 = vsub.s32 0, %v1324
    %v1326 = vrot.slane %v1321, %v1325
    %v1327 = vlaneseq
    %v1328 = vshrl.u32 %v1327, 7
    %v1329 = vsub.s32 1, %v1328
    %v1330 = vrot.slane %v1321, %v1329
    %v1358 = vunpack.c.l.b16 %v1296
    %v1359 = vunpack.c.h.b16 %v1296
    %v1360 = vunpack.c.l.b16 %v1297
    %v1361 = vunpack.c.h.b16 %v1297
    %v1362 = vunpack.c.l.b16 %v1298
    %v1363 = vunpack.c.h.b16 %v1298
    %v1364 = vunpack.c.l.b16 %v1299
    %v1365 = vunpack.c.h.b16 %v1299
    %v1366 = vunpack.c.l.b16 %v1300
    %v1367 = vunpack.c.h.b16 %v1300
    %v1368 = vunpack.c.l.b16 %v1301
    %v1369 = vunpack.c.h.b16 %v1301
    %v1370 = vunpack.c.l.b16 %v1302
    %v1371 = vunpack.c.h.b16 %v1302
    %v1372 = vunpack.c.l.b16 %v1303
    %v1373 = vunpack.c.h.b16 %v1303
    %v1374 = vunpack.c.l.b16 %v1304
    %v1375 = vunpack.c.h.b16 %v1304
    %v1376 = vunpack.c.l.b16 %v1305
    %v1377 = vunpack.c.h.b16 %v1305
    %v1378 = vunpack.c.l.b16 %v1306
    %v1379 = vunpack.c.h.b16 %v1306
    %v1380 = vunpack.c.l.b16 %v1307
    %v1381 = vunpack.c.h.b16 %v1307
    %v1382 = vunpack.c.l.b16 %v1308
    %v1383 = vunpack.c.h.b16 %v1308
    %v1384 = vunpack.c.l.b16 %v1309
    %v1385 = vunpack.c.h.b16 %v1309
    %v1386 = vunpack.c.l.b16 %v1310
    %v1387 = vunpack.c.h.b16 %v1310
    %v1388 = vunpack.c.l.b16 %v1311
    %v1389 = vunpack.c.h.b16 %v1311
    %v1390 = vunpack.c.l.b16 %v1312
    %v1391 = vunpack.c.h.b16 %v1312
    %v1392 = vunpack.c.l.b16 %v1313
    %v1393 = vunpack.c.h.b16 %v1313
    %v1394 = vunpack.c.l.b16 %v1314
    %v1395 = vunpack.c.h.b16 %v1314
    %v1396 = vunpack.c.l.b16 %v1315
    %v1397 = vunpack.c.h.b16 %v1315
    %v1398 = vunpack.c.l.b16 %v1316
    %v1399 = vunpack.c.h.b16 %v1316
    %v1400 = vunpack.c.l.b16 %v1317
    %v1401 = vunpack.c.h.b16 %v1317
    %v1402 = vunpack.c.l.b16 %v1318
    %v1403 = vunpack.c.h.b16 %v1318
    %v1404 = vunpack.c.l.b16 %v1319
    %v1405 = vunpack.c.h.b16 %v1319
    %v1406 = vunpack.c.l.b16 %v1320
    %v1407 = vunpack.c.h.b16 %v1320
    %v1408 = vpack.c.b16 %v1360, %v1358
    %v1409 = vpack.c.b16 %v1361, %v1359
    %v1410 = vpack.c.b16 %v1364, %v1362
    %v1411 = vpack.c.b16 %v1365, %v1363
    %v1412 = vpack.c.b16 %v1368, %v1366
    %v1413 = vpack.c.b16 %v1369, %v1367
    %v1414 = vpack.c.b16 %v1372, %v1370
    %v1415 = vpack.c.b16 %v1373, %v1371
    %v1416 = vpack.c.b16 %v1376, %v1374
    %v1417 = vpack.c.b16 %v1377, %v1375
    %v1418 = vpack.c.b16 %v1380, %v1378
    %v1419 = vpack.c.b16 %v1381, %v1379
    %v1420 = vpack.c.b16 %v1384, %v1382
    %v1421 = vpack.c.b16 %v1385, %v1383
    %v1422 = vpack.c.b16 %v1388, %v1386
    %v1423 = vpack.c.b16 %v1389, %v1387
    %v1424 = vpack.c.b16 %v1392, %v1390
    %v1425 = vpack.c.b16 %v1393, %v1391
    %v1426 = vpack.c.b16 %v1396, %v1394
    %v1427 = vpack.c.b16 %v1397, %v1395
    %v1428 = vpack.c.b16 %v1400, %v1398
    %v1429 = vpack.c.b16 %v1401, %v1399
    %v1430 = vpack.c.b16 %v1404, %v1402
    %v1431 = vpack.c.b16 %v1405, %v1403
    %v1432 = vpack.c.b16 %v1406, %v1406
    %v1433 = vpack.c.b16 %v1407, %v1407
    %v1459 = vsel %vm1013, %v1295, 0
    %v1462 = vsel %vm1017, %v1432, 0
    %v1465 = vsel %vm1017, %v1433, 0
    %1467 = vmatprep.subr.bf16.mxu0 %v1409
    %1468 = vmatpush1.bf16.msra.mxu0 %v1408
    %1469 = vmatprep.subr.bf16.mxu0 %v1411
    %1470 = vmatpush1.bf16.msra.mxu0 %v1410
    %1471 = vmatprep.subr.bf16.mxu0 %v1413
    %1472 = vmatpush1.bf16.msra.mxu0 %v1412
    %1473 = vmatprep.subr.bf16.mxu0 %v1415
    %1474 = vmatpush1.bf16.msra.mxu0 %v1414
    %1475 = vmatprep.subr.bf16.mxu0 %v1417
    %1476 = vmatpush1.bf16.msra.mxu0 %v1416
    %1477 = vmatprep.subr.bf16.mxu0 %v1419
    %1478 = vmatpush1.bf16.msra.mxu0 %v1418
    %1479 = vmatprep.subr.bf16.mxu0 %v1421
    %1480 = vmatpush1.bf16.msra.mxu0 %v1420
    %1481 = vmatprep.subr.bf16.mxu0 %v1423
    %1482 = vmatpush1.bf16.msra.mxu0 %v1422
    %1483 = vmatprep.subr.bf16.mxu0 %v1425
    %1484 = vmatpush1.bf16.msra.mxu0 %v1424
    %1485 = vmatprep.subr.bf16.mxu0 %v1427
    %1486 = vmatpush1.bf16.msra.mxu0 %v1426
    %1487 = vmatprep.subr.bf16.mxu0 %v1429
    %1488 = vmatpush1.bf16.msra.mxu0 %v1428
    %1489 = vmatprep.subr.bf16.mxu0 %v1431
    %1490 = vmatpush1.bf16.msra.mxu0 %v1430
    %1491 = vmatprep.subr.bf16.mxu0 %v1465
    %1492 = vmatpush1.bf16.msra.mxu0 %v1462
    %1493 = vmatprep.subr.bf16.mxu0 0
    %1494 = vmatpush1.bf16.msra.mxu0 0
    %1495 = vmatprep.subr.bf16.mxu0 0
    %1496 = vmatpush1.bf16.msra.mxu0 0
    %1497 = vmatprep.subr.bf16.mxu0 0
    %1498 = vmatpush1.bf16.msra.mxu0 0
    %1499 = vmatprep.mubr.bf16.mxu0 %v1459
    %1500 = vmatmul.mubr.bf16.gmra.mrb[0].mxu0 %v1294
    %v1501 = vpop.f32.mrb[0].mxu0
    %v1502 = vadd.f32 %v1326, %v1501
    %v1503 = vpop.f32.mrb[0].mxu0
    %v1504 = vadd.f32 %v1330, %v1503
    %v1505 = vpop.f32.mrb[0].mxu0
    %v1506 = vpop.f32.mrb[0].mxu0
    %1507 = vdwg.mxu0
    %v1508 = vmax.f32 %v1502, 0.0
    %v1509 = vmax.f32 %v1504, 0.0
    %v1510 = vpack.c.bf16 %v1508, %v1508
    %v1511 = vpack.c.bf16 %v1509, %v1509
    %v1512 = vld [vmem:[%s12] sm:$0xff]
    %v1513 = vld [vmem:[%s12 + $0x8] sm:$0xff]
    %v1514 = vld [vmem:[%s12 + $0x10] sm:$0xff]
    %v1515 = vld [vmem:[%s12 + $0x18] sm:$0xf]
    %v1516 = vld [vmem:[%s12 + $0x1c] sm:$0xff]
    %v1517 = vld [vmem:[%s12 + $0x24] sm:$0xff]
    %v1518 = vld [vmem:[%s12 + $0x2c] sm:$0xff]
    %v1519 = vld [vmem:[%s12 + $0x34] sm:$0xf]
    %v1520 = vld [vmem:[%s12 + $0x38] sm:$0xff]
    %v1521 = vld [vmem:[%s12 + $0x40] sm:$0xff]
    %v1522 = vld [vmem:[%s12 + $0x48] sm:$0xff]
    %v1523 = vld [vmem:[%s12 + $0x50] sm:$0xf]
    %v1524 = vld [vmem:[%s12 + $0x54] sm:$0xff]
    %v1525 = vld [vmem:[%s12 + $0x5c] sm:$0xff]
    %v1526 = vld [vmem:[%s12 + $0x64] sm:$0xff]
    %v1527 = vld [vmem:[%s12 + $0x6c] sm:$0xf]
    %v1528 = vld [vmem:[%s12 + $0x70] sm:$0xff]
    %v1529 = vld [vmem:[%s12 + $0x78] sm:$0xff]
    %v1530 = vld [vmem:[%s12 + $0x80] sm:$0xff]
    %v1531 = vld [vmem:[%s12 + $0x88] sm:$0xf]
    %v1532 = vld [vmem:[%s12 + $0x8c] sm:$0xff]
    %v1533 = vld [vmem:[%s12 + $0x94] sm:$0xff]
    %v1534 = vld [vmem:[%s12 + $0x9c] sm:$0xff]
    %v1535 = vld [vmem:[%s12 + $0xa4] sm:$0xf]
    %v1536 = vld [vmem:[%s12 + $0xa8] sm:$0xff]
    %v1537 = vld [vmem:[%s12 + $0xb0] sm:$0xff]
    %v1538 = vld [vmem:[%s12 + $0xb8] sm:$0xff]
    %v1539 = vld [vmem:[%s12 + $0xc0] sm:$0xf]
    %v1540 = vld [vmem:[%s12 + $0xc4] sm:$0xff]
    %v1541 = vld [vmem:[%s12 + $0xcc] sm:$0xff]
    %v1542 = vld [vmem:[%s12 + $0xd4] sm:$0xff]
    %v1543 = vld [vmem:[%s12 + $0xdc] sm:$0xf]
    %v1544 = vld [vmem:[%s12 + $0xe0] sm:$0xff]
    %v1545 = vld [vmem:[%s12 + $0xe8] sm:$0xff]
    %v1546 = vld [vmem:[%s12 + $0xf0] sm:$0xff]
    %v1547 = vld [vmem:[%s12 + $0xf8] sm:$0xf]
    %v1548 = vld [vmem:[%s12 + $0xfc] sm:$0xff]
    %v1549 = vld [vmem:[%s12 + $0x104] sm:$0xff]
    %v1550 = vld [vmem:[%s12 + $0x10c] sm:$0xff]
    %v1551 = vld [vmem:[%s12 + $0x114] sm:$0xf]
    %v1552 = vld [vmem:[%s12 + $0x118] sm:$0xff]
    %v1553 = vld [vmem:[%s12 + $0x120] sm:$0xff]
    %v1554 = vld [vmem:[%s12 + $0x128] sm:$0xff]
    %v1555 = vld [vmem:[%s12 + $0x130] sm:$0xf]
    %v1556 = vld [vmem:[%s12 + $0x134] sm:$0xff]
    %v1557 = vld [vmem:[%s12 + $0x13c] sm:$0xff]
    %v1558 = vld [vmem:[%s12 + $0x144] sm:$0xff]
    %v1559 = vld [vmem:[%s12 + $0x14c] sm:$0xf]
    %v1560 = vld [vmem:[%s12 + $0x150] sm:$0xff]
    %v1561 = vld [vmem:[%s12 + $0x158] sm:$0xff]
    %v1562 = vld [vmem:[%s12 + $0x160] sm:$0xff]
    %v1563 = vld [vmem:[%s12 + $0x168] sm:$0xf]
    %v1564 = vld [vmem:[%s12 + $0x16c] sm:$0xff]
    %v1565 = vld [vmem:[%s12 + $0x174] sm:$0xff]
    %v1566 = vld [vmem:[%s12 + $0x17c] sm:$0xff]
    %v1567 = vld [vmem:[%s12 + $0x184] sm:$0xf]
    %v1568 = vld [vmem:[%s12 + $0x188] sm:$0xff]
    %v1569 = vld [vmem:[%s12 + $0x190] sm:$0xff]
    %v1570 = vld [vmem:[%s12 + $0x198] sm:$0xff]
    %v1571 = vld [vmem:[%s12 + $0x1a0] sm:$0xf]
    %v1572 = vld [vmem:[%s12 + $0x1a4] sm:$0xff]
    %v1573 = vld [vmem:[%s12 + $0x1ac] sm:$0xff]
    %v1574 = vld [vmem:[%s12 + $0x1b4] sm:$0xff]
    %v1575 = vld [vmem:[%s12 + $0x1bc] sm:$0xf]
    %v1576 = vld [vmem:[%s12 + $0x1c0] sm:$0xff]
    %v1577 = vld [vmem:[%s12 + $0x1c8] sm:$0xff]
    %v1578 = vld [vmem:[%s12 + $0x1d0] sm:$0xff]
    %v1579 = vld [vmem:[%s12 + $0x1d8] sm:$0xf]
    %v1580 = vld [vmem:[%s12 + $0x1dc] sm:$0xff]
    %v1581 = vld [vmem:[%s12 + $0x1e4] sm:$0xff]
    %v1582 = vld [vmem:[%s12 + $0x1ec] sm:$0xff]
    %v1583 = vld [vmem:[%s12 + $0x1f4] sm:$0xf]
    %v1584 = vld [vmem:[%s12 + $0x1f8] sm:$0xff]
    %v1585 = vld [vmem:[%s12 + $0x200] sm:$0xff]
    %v1586 = vld [vmem:[%s12 + $0x208] sm:$0xff]
    %v1587 = vld [vmem:[%s12 + $0x210] sm:$0xf]
    %v1588 = vld [vmem:[%s12 + $0x214] sm:$0xff]
    %v1589 = vld [vmem:[%s12 + $0x21c] sm:$0xff]
    %v1590 = vld [vmem:[%s12 + $0x224] sm:$0xff]
    %v1591 = vld [vmem:[%s12 + $0x22c] sm:$0xf]
    %v1592 = vld [vmem:[%s12 + $0x230] sm:$0xff]
    %v1593 = vld [vmem:[%s12 + $0x238] sm:$0xff]
    %v1594 = vld [vmem:[%s12 + $0x240] sm:$0xff]
    %v1595 = vld [vmem:[%s12 + $0x248] sm:$0xf]
    %v1596 = vld [vmem:[%s12 + $0x24c] sm:$0xff]
    %v1597 = vld [vmem:[%s12 + $0x254] sm:$0xff]
    %v1598 = vld [vmem:[%s12 + $0x25c] sm:$0xff]
    %v1599 = vld [vmem:[%s12 + $0x264] sm:$0xf]
    %v1600 = vld [vmem:[%s12 + $0x268] sm:$0xff]
    %v1601 = vld [vmem:[%s12 + $0x270] sm:$0xff]
    %v1602 = vld [vmem:[%s12 + $0x278] sm:$0xff]
    %v1603 = vld [vmem:[%s12 + $0x280] sm:$0xf]
    %v1604 = vld [vmem:[%s12 + $0x284] sm:$0xff]
    %v1605 = vld [vmem:[%s12 + $0x28c] sm:$0xff]
    %v1606 = vld [vmem:[%s12 + $0x294] sm:$0xff]
    %v1607 = vld [vmem:[%s12 + $0x29c] sm:$0xf]
    %v1608 = vld [vmem:[%s12 + $0x2a0] sm:$0xff]
    %v1609 = vld [vmem:[%s12 + $0x2a8] sm:$0xff]
    %v1610 = vld [vmem:[%s12 + $0x2b0] sm:$0xff]
    %v1611 = vld [vmem:[%s12 + $0x2b8] sm:$0xf]
    %v1612 = vld [vmem:[%s13] sm:$0x7f]
    %v1614 = vlaneseq
    %v1615 = vshrl.u32 %v1614, 7
    %v1616 = vsub.s32 0, %v1615
    %v1617 = vrot.slane %v1612, %v1616
    %v1618 = vlaneseq
    %v1619 = vshrl.u32 %v1618, 7
    %v1620 = vsub.s32 1, %v1619
    %v1621 = vrot.slane %v1612, %v1620
    %v1622 = vlaneseq
    %v1623 = vshrl.u32 %v1622, 7
    %v1624 = vsub.s32 2, %v1623
    %v1625 = vrot.slane %v1612, %v1624
    %v1626 = vlaneseq
    %v1627 = vshrl.u32 %v1626, 7
    %v1628 = vsub.s32 3, %v1627
    %v1629 = vrot.slane %v1612, %v1628
    %v1630 = vlaneseq
    %v1631 = vshrl.u32 %v1630, 7
    %v1632 = vsub.s32 4, %v1631
    %v1633 = vrot.slane %v1612, %v1632
    %v1634 = vlaneseq
    %v1635 = vshrl.u32 %v1634, 7
    %v1636 = vsub.s32 5, %v1635
    %v1637 = vrot.slane %v1612, %v1636
    %v1638 = vlaneseq
    %v1639 = vshrl.u32 %v1638, 7
    %v1640 = vsub.s32 6, %v1639
    %v1641 = vrot.slane %v1612, %v1640
    %v1749 = vunpack.c.l.b16 %v1512
    %v1750 = vunpack.c.h.b16 %v1512
    %v1751 = vunpack.c.l.b16 %v1513
    %v1752 = vunpack.c.h.b16 %v1513
    %v1753 = vunpack.c.l.b16 %v1514
    %v1754 = vunpack.c.h.b16 %v1514
    %v1755 = vunpack.c.l.b16 %v1515
    %v1756 = vunpack.c.l.b16 %v1516
    %v1757 = vunpack.c.h.b16 %v1516
    %v1758 = vunpack.c.l.b16 %v1517
    %v1759 = vunpack.c.h.b16 %v1517
    %v1760 = vunpack.c.l.b16 %v1518
    %v1761 = vunpack.c.h.b16 %v1518
    %v1762 = vunpack.c.l.b16 %v1519
    %v1763 = vunpack.c.l.b16 %v1520
    %v1764 = vunpack.c.h.b16 %v1520
    %v1765 = vunpack.c.l.b16 %v1521
    %v1766 = vunpack.c.h.b16 %v1521
    %v1767 = vunpack.c.l.b16 %v1522
    %v1768 = vunpack.c.h.b16 %v1522
    %v1769 = vunpack.c.l.b16 %v1523
    %v1770 = vunpack.c.l.b16 %v1524
    %v1771 = vunpack.c.h.b16 %v1524
    %v1772 = vunpack.c.l.b16 %v1525
    %v1773 = vunpack.c.h.b16 %v1525
    %v1774 = vunpack.c.l.b16 %v1526
    %v1775 = vunpack.c.h.b16 %v1526
    %v1776 = vunpack.c.l.b16 %v1527
    %v1777 = vunpack.c.l.b16 %v1528
    %v1778 = vunpack.c.h.b16 %v1528
    %v1779 = vunpack.c.l.b16 %v1529
    %v1780 = vunpack.c.h.b16 %v1529
    %v1781 = vunpack.c.l.b16 %v1530
    %v1782 = vunpack.c.h.b16 %v1530
    %v1783 = vunpack.c.l.b16 %v1531
    %v1784 = vunpack.c.l.b16 %v1532
    %v1785 = vunpack.c.h.b16 %v1532
    %v1786 = vunpack.c.l.b16 %v1533
    %v1787 = vunpack.c.h.b16 %v1533
    %v1788 = vunpack.c.l.b16 %v1534
    %v1789 = vunpack.c.h.b16 %v1534
    %v1790 = vunpack.c.l.b16 %v1535
    %v1791 = vunpack.c.l.b16 %v1536
    %v1792 = vunpack.c.h.b16 %v1536
    %v1793 = vunpack.c.l.b16 %v1537
    %v1794 = vunpack.c.h.b16 %v1537
    %v1795 = vunpack.c.l.b16 %v1538
    %v1796 = vunpack.c.h.b16 %v1538
    %v1797 = vunpack.c.l.b16 %v1539
    %v1798 = vunpack.c.l.b16 %v1540
    %v1799 = vunpack.c.h.b16 %v1540
    %v1800 = vunpack.c.l.b16 %v1541
    %v1801 = vunpack.c.h.b16 %v1541
    %v1802 = vunpack.c.l.b16 %v1542
    %v1803 = vunpack.c.h.b16 %v1542
    %v1804 = vunpack.c.l.b16 %v1543
    %v1805 = vunpack.c.l.b16 %v1544
    %v1806 = vunpack.c.h.b16 %v1544
    %v1807 = vunpack.c.l.b16 %v1545
    %v1808 = vunpack.c.h.b16 %v1545
    %v1809 = vunpack.c.l.b16 %v1546
    %v1810 = vunpack.c.h.b16 %v1546
    %v1811 = vunpack.c.l.b16 %v1547
    %v1812 = vunpack.c.l.b16 %v1548
    %v1813 = vunpack.c.h.b16 %v1548
    %v1814 = vunpack.c.l.b16 %v1549
    %v1815 = vunpack.c.h.b16 %v1549
    %v1816 = vunpack.c.l.b16 %v1550
    %v1817 = vunpack.c.h.b16 %v1550
    %v1818 = vunpack.c.l.b16 %v1551
    %v1819 = vunpack.c.l.b16 %v1552
    %v1820 = vunpack.c.h.b16 %v1552
    %v1821 = vunpack.c.l.b16 %v1553
    %v1822 = vunpack.c.h.b16 %v1553
    %v1823 = vunpack.c.l.b16 %v1554
    %v1824 = vunpack.c.h.b16 %v1554
    %v1825 = vunpack.c.l.b16 %v1555
    %v1826 = vunpack.c.l.b16 %v1556
    %v1827 = vunpack.c.h.b16 %v1556
    %v1828 = vunpack.c.l.b16 %v1557
    %v1829 = vunpack.c.h.b16 %v1557
    %v1830 = vunpack.c.l.b16 %v1558
    %v1831 = vunpack.c.h.b16 %v1558
    %v1832 = vunpack.c.l.b16 %v1559
    %v1833 = vunpack.c.l.b16 %v1560
    %v1834 = vunpack.c.h.b16 %v1560
    %v1835 = vunpack.c.l.b16 %v1561
    %v1836 = vunpack.c.h.b16 %v1561
    %v1837 = vunpack.c.l.b16 %v1562
    %v1838 = vunpack.c.h.b16 %v1562
    %v1839 = vunpack.c.l.b16 %v1563
    %v1840 = vunpack.c.l.b16 %v1564
    %v1841 = vunpack.c.h.b16 %v1564
    %v1842 = vunpack.c.l.b16 %v1565
    %v1843 = vunpack.c.h.b16 %v1565
    %v1844 = vunpack.c.l.b16 %v1566
    %v1845 = vunpack.c.h.b16 %v1566
    %v1846 = vunpack.c.l.b16 %v1567
    %v1847 = vunpack.c.l.b16 %v1568
    %v1848 = vunpack.c.h.b16 %v1568
    %v1849 = vunpack.c.l.b16 %v1569
    %v1850 = vunpack.c.h.b16 %v1569
    %v1851 = vunpack.c.l.b16 %v1570
    %v1852 = vunpack.c.h.b16 %v1570
    %v1853 = vunpack.c.l.b16 %v1571
    %v1854 = vunpack.c.l.b16 %v1572
    %v1855 = vunpack.c.h.b16 %v1572
    %v1856 = vunpack.c.l.b16 %v1573
    %v1857 = vunpack.c.h.b16 %v1573
    %v1858 = vunpack.c.l.b16 %v1574
    %v1859 = vunpack.c.h.b16 %v1574
    %v1860 = vunpack.c.l.b16 %v1575
    %v1861 = vunpack.c.l.b16 %v1576
    %v1862 = vunpack.c.h.b16 %v1576
    %v1863 = vunpack.c.l.b16 %v1577
    %v1864 = vunpack.c.h.b16 %v1577
    %v1865 = vunpack.c.l.b16 %v1578
    %v1866 = vunpack.c.h.b16 %v1578
    %v1867 = vunpack.c.l.b16 %v1579
    %v1868 = vunpack.c.l.b16 %v1580
    %v1869 = vunpack.c.h.b16 %v1580
    %v1870 = vunpack.c.l.b16 %v1581
    %v1871 = vunpack.c.h.b16 %v1581
    %v1872 = vunpack.c.l.b16 %v1582
    %v1873 = vunpack.c.h.b16 %v1582
    %v1874 = vunpack.c.l.b16 %v1583
    %v1875 = vunpack.c.l.b16 %v1584
    %v1876 = vunpack.c.h.b16 %v1584
    %v1877 = vunpack.c.l.b16 %v1585
    %v1878 = vunpack.c.h.b16 %v1585
    %v1879 = vunpack.c.l.b16 %v1586
    %v1880 = vunpack.c.h.b16 %v1586
    %v1881 = vunpack.c.l.b16 %v1587
    %v1882 = vunpack.c.l.b16 %v1588
    %v1883 = vunpack.c.h.b16 %v1588
    %v1884 = vunpack.c.l.b16 %v1589
    %v1885 = vunpack.c.h.b16 %v1589
    %v1886 = vunpack.c.l.b16 %v1590
    %v1887 = vunpack.c.h.b16 %v1590
    %v1888 = vunpack.c.l.b16 %v1591
    %v1889 = vunpack.c.l.b16 %v1592
    %v1890 = vunpack.c.h.b16 %v1592
    %v1891 = vunpack.c.l.b16 %v1593
    %v1892 = vunpack.c.h.b16 %v1593
    %v1893 = vunpack.c.l.b16 %v1594
    %v1894 = vunpack.c.h.b16 %v1594
    %v1895 = vunpack.c.l.b16 %v1595
    %v1896 = vunpack.c.l.b16 %v1596
    %v1897 = vunpack.c.h.b16 %v1596
    %v1898 = vunpack.c.l.b16 %v1597
    %v1899 = vunpack.c.h.b16 %v1597
    %v1900 = vunpack.c.l.b16 %v1598
    %v1901 = vunpack.c.h.b16 %v1598
    %v1902 = vunpack.c.l.b16 %v1599
    %v1903 = vunpack.c.l.b16 %v1600
    %v1904 = vunpack.c.h.b16 %v1600
    %v1905 = vunpack.c.l.b16 %v1601
    %v1906 = vunpack.c.h.b16 %v1601
    %v1907 = vunpack.c.l.b16 %v1602
    %v1908 = vunpack.c.h.b16 %v1602
    %v1909 = vunpack.c.l.b16 %v1603
    %v1910 = vunpack.c.l.b16 %v1604
    %v1911 = vunpack.c.h.b16 %v1604
    %v1912 = vunpack.c.l.b16 %v1605
    %v1913 = vunpack.c.h.b16 %v1605
    %v1914 = vunpack.c.l.b16 %v1606
    %v1915 = vunpack.c.h.b16 %v1606
    %v1916 = vunpack.c.l.b16 %v1607
    %v1917 = vunpack.c.l.b16 %v1608
    %v1918 = vunpack.c.h.b16 %v1608
    %v1919 = vunpack.c.l.b16 %v1609
    %v1920 = vunpack.c.h.b16 %v1609
    %v1921 = vunpack.c.l.b16 %v1610
    %v1922 = vunpack.c.h.b16 %v1610
    %v1923 = vunpack.c.l.b16 %v1611
    %v1924 = vpack.c.b16 %v1756, %v1749
    %v1925 = vpack.c.b16 %v1757, %v1750
    %v1926 = vpack.c.b16 %v1758, %v1751
    %v1927 = vpack.c.b16 %v1759, %v1752
    %v1928 = vpack.c.b16 %v1760, %v1753
    %v1929 = vpack.c.b16 %v1761, %v1754
    %v1930 = vpack.c.b16 %v1762, %v1755
    %v1931 = vpack.c.b16 %v1770, %v1763
    %v1932 = vpack.c.b16 %v1771, %v1764
    %v1933 = vpack.c.b16 %v1772, %v1765
    %v1934 = vpack.c.b16 %v1773, %v1766
    %v1935 = vpack.c.b16 %v1774, %v1767
    %v1936 = vpack.c.b16 %v1775, %v1768
    %v1937 = vpack.c.b16 %v1776, %v1769
    %v1938 = vpack.c.b16 %v1784, %v1777
    %v1939 = vpack.c.b16 %v1785, %v1778
    %v1940 = vpack.c.b16 %v1786, %v1779
    %v1941 = vpack.c.b16 %v1787, %v1780
    %v1942 = vpack.c.b16 %v1788, %v1781
    %v1943 = vpack.c.b16 %v1789, %v1782
    %v1944 = vpack.c.b16 %v1790, %v1783
    %v1945 = vpack.c.b16 %v1798, %v1791
    %v1946 = vpack.c.b16 %v1799, %v1792
    %v1947 = vpack.c.b16 %v1800, %v1793
    %v1948 = vpack.c.b16 %v1801, %v1794
    %v1949 = vpack.c.b16 %v1802, %v1795
    %v1950 = vpack.c.b16 %v1803, %v1796
    %v1951 = vpack.c.b16 %v1804, %v1797
    %v1952 = vpack.c.b16 %v1812, %v1805
    %v1953 = vpack.c.b16 %v1813, %v1806
    %v1954 = vpack.c.b16 %v1814, %v1807
    %v1955 = vpack.c.b16 %v1815, %v1808
    %v1956 = vpack.c.b16 %v1816, %v1809
    %v1957 = vpack.c.b16 %v1817, %v1810
    %v1958 = vpack.c.b16 %v1818, %v1811
    %v1959 = vpack.c.b16 %v1826, %v1819
    %v1960 = vpack.c.b16 %v1827, %v1820
    %v1961 = vpack.c.b16 %v1828, %v1821
    %v1962 = vpack.c.b16 %v1829, %v1822
    %v1963 = vpack.c.b16 %v1830, %v1823
    %v1964 = vpack.c.b16 %v1831, %v1824
    %v1965 = vpack.c.b16 %v1832, %v1825
    %v1966 = vpack.c.b16 %v1840, %v1833
    %v1967 = vpack.c.b16 %v1841, %v1834
    %v1968 = vpack.c.b16 %v1842, %v1835
    %v1969 = vpack.c.b16 %v1843, %v1836
    %v1970 = vpack.c.b16 %v1844, %v1837
    %v1971 = vpack.c.b16 %v1845, %v1838
    %v1972 = vpack.c.b16 %v1846, %v1839
    %v1973 = vpack.c.b16 %v1854, %v1847
    %v1974 = vpack.c.b16 %v1855, %v1848
    %v1975 = vpack.c.b16 %v1856, %v1849
    %v1976 = vpack.c.b16 %v1857, %v1850
    %v1977 = vpack.c.b16 %v1858, %v1851
    %v1978 = vpack.c.b16 %v1859, %v1852
    %v1979 = vpack.c.b16 %v1860, %v1853
    %v1980 = vpack.c.b16 %v1868, %v1861
    %v1981 = vpack.c.b16 %v1869, %v1862
    %v1982 = vpack.c.b16 %v1870, %v1863
    %v1983 = vpack.c.b16 %v1871, %v1864
    %v1984 = vpack.c.b16 %v1872, %v1865
    %v1985 = vpack.c.b16 %v1873, %v1866
    %v1986 = vpack.c.b16 %v1874, %v1867
    %v1987 = vpack.c.b16 %v1882, %v1875
    %v1988 = vpack.c.b16 %v1883, %v1876
    %v1989 = vpack.c.b16 %v1884, %v1877
    %v1990 = vpack.c.b16 %v1885, %v1878
    %v1991 = vpack.c.b16 %v1886, %v1879
    %v1992 = vpack.c.b16 %v1887, %v1880
    %v1993 = vpack.c.b16 %v1888, %v1881
    %v1994 = vpack.c.b16 %v1896, %v1889
    %v1995 = vpack.c.b16 %v1897, %v1890
    %v1996 = vpack.c.b16 %v1898, %v1891
    %v1997 = vpack.c.b16 %v1899, %v1892
    %v1998 = vpack.c.b16 %v1900, %v1893
    %v1999 = vpack.c.b16 %v1901, %v1894
    %v2000 = vpack.c.b16 %v1902, %v1895
    %v2001 = vpack.c.b16 %v1910, %v1903
    %v2002 = vpack.c.b16 %v1911, %v1904
    %v2003 = vpack.c.b16 %v1912, %v1905
    %v2004 = vpack.c.b16 %v1913, %v1906
    %v2005 = vpack.c.b16 %v1914, %v1907
    %v2006 = vpack.c.b16 %v1915, %v1908
    %v2007 = vpack.c.b16 %v1916, %v1909
    %v2008 = vpack.c.b16 %v1917, %v1917
    %v2009 = vpack.c.b16 %v1918, %v1918
    %v2010 = vpack.c.b16 %v1919, %v1919
    %v2011 = vpack.c.b16 %v1920, %v1920
    %v2012 = vpack.c.b16 %v1921, %v1921
    %v2013 = vpack.c.b16 %v1922, %v1922
    %v2014 = vpack.c.b16 %v1923, %v1923
    %v2100 = vsel %vm1013, %v1511, 0
    %v2103 = vsel %vm1017, %v2008, 0
    %v2106 = vsel %vm1017, %v2009, 0
    %v2109 = vsel %vm1017, %v2010, 0
    %v2112 = vsel %vm1017, %v2011, 0
    %v2115 = vsel %vm1017, %v2012, 0
    %v2118 = vsel %vm1017, %v2013, 0
    %v2121 = vsel %vm1017, %v2014, 0
    %2123 = vmatprep.subr.bf16.mxu0 %v1925
    %2124 = vmatpush1.bf16.msra.mxu0 %v1924
    %2125 = vmatprep.subr.bf16.mxu0 %v1932
    %2126 = vmatpush1.bf16.msra.mxu0 %v1931
    %2127 = vmatprep.subr.bf16.mxu0 %v1939
    %2128 = vmatpush1.bf16.msra.mxu0 %v1938
    %2129 = vmatprep.subr.bf16.mxu0 %v1946
    %2130 = vmatpush1.bf16.msra.mxu0 %v1945
    %2131 = vmatprep.subr.bf16.mxu0 %v1953
    %2132 = vmatpush1.bf16.msra.mxu0 %v1952
    %2133 = vmatprep.subr.bf16.mxu0 %v1960
    %2134 = vmatpush1.bf16.msra.mxu0 %v1959
    %2135 = vmatprep.subr.bf16.mxu0 %v1967
    %2136 = vmatpush1.bf16.msra.mxu0 %v1966
    %2137 = vmatprep.subr.bf16.mxu0 %v1974
    %2138 = vmatpush1.bf16.msra.mxu0 %v1973
    %2139 = vmatprep.subr.bf16.mxu0 %v1981
    %2140 = vmatpush1.bf16.msra.mxu0 %v1980
    %2141 = vmatprep.subr.bf16.mxu0 %v1988
    %2142 = vmatpush1.bf16.msra.mxu0 %v1987
    %2143 = vmatprep.subr.bf16.mxu0 %v1995
    %2144 = vmatpush1.bf16.msra.mxu0 %v1994
    %2145 = vmatprep.subr.bf16.mxu0 %v2002
    %2146 = vmatpush1.bf16.msra.mxu0 %v2001
    %2147 = vmatprep.subr.bf16.mxu0 %v2106
    %2148 = vmatpush1.bf16.msra.mxu0 %v2103
    %2149 = vmatprep.subr.bf16.mxu0 0
    %2150 = vmatpush1.bf16.msra.mxu0 0
    %2151 = vmatprep.subr.bf16.mxu0 0
    %2152 = vmatpush1.bf16.msra.mxu0 0
    %2153 = vmatprep.subr.bf16.mxu0 0
    %2154 = vmatpush1.bf16.msra.mxu0 0
    %2155 = vmatprep.mubr.bf16.mxu0 %v2100
    %2156 = vmatmul.mubr.bf16.gmra.mrb[0].mxu0 %v1510
    %v2157 = vpop.f32.mrb[0].mxu0
    %v2158 = vadd.f32 %v1617, %v2157
    %v2159 = vpop.f32.mrb[0].mxu0
    %v2160 = vadd.f32 %v1621, %v2159
    %v2161 = vpop.f32.mrb[0].mxu0
    %v2162 = vpop.f32.mrb[0].mxu0
    %2163 = vdwg.mxu0
    %2164 = vmatprep.subr.bf16.mxu0 %v1927
    %2165 = vmatpush1.bf16.msra.mxu0 %v1926
    %2166 = vmatprep.subr.bf16.mxu0 %v1934
    %2167 = vmatpush1.bf16.msra.mxu0 %v1933
    %2168 = vmatprep.subr.bf16.mxu0 %v1941
    %2169 = vmatpush1.bf16.msra.mxu0 %v1940
    %2170 = vmatprep.subr.bf16.mxu0 %v1948
    %2171 = vmatpush1.bf16.msra.mxu0 %v1947
    %2172 = vmatprep.subr.bf16.mxu0 %v1955
    %2173 = vmatpush1.bf16.msra.mxu0 %v1954
    %2174 = vmatprep.subr.bf16.mxu0 %v1962
    %2175 = vmatpush1.bf16.msra.mxu0 %v1961
    %2176 = vmatprep.subr.bf16.mxu0 %v1969
    %2177 = vmatpush1.bf16.msra.mxu0 %v1968
    %2178 = vmatprep.subr.bf16.mxu0 %v1976
    %2179 = vmatpush1.bf16.msra.mxu0 %v1975
    %2180 = vmatprep.subr.bf16.mxu0 %v1983
    %2181 = vmatpush1.bf16.msra.mxu0 %v1982
    %2182 = vmatprep.subr.bf16.mxu0 %v1990
    %2183 = vmatpush1.bf16.msra.mxu0 %v1989
    %2184 = vmatprep.subr.bf16.mxu0 %v1997
    %2185 = vmatpush1.bf16.msra.mxu0 %v1996
    %2186 = vmatprep.subr.bf16.mxu0 %v2004
    %2187 = vmatpush1.bf16.msra.mxu0 %v2003
    %2188 = vmatprep.subr.bf16.mxu0 %v2112
    %2189 = vmatpush1.bf16.msra.mxu0 %v2109
    %2190 = vmatprep.subr.bf16.mxu0 0
    %2191 = vmatpush1.bf16.msra.mxu0 0
    %2192 = vmatprep.subr.bf16.mxu0 0
    %2193 = vmatpush1.bf16.msra.mxu0 0
    %2194 = vmatprep.subr.bf16.mxu0 0
    %2195 = vmatpush1.bf16.msra.mxu0 0
    %2196 = vmatprep.mubr.bf16.mxu0 %v2100
    %2197 = vmatmul.mubr.bf16.gmra.mrb[0].mxu0 %v1510
    %v2198 = vpop.f32.mrb[0].mxu0
    %v2199 = vadd.f32 %v1625, %v2198
    %v2200 = vpop.f32.mrb[0].mxu0
    %v2201 = vadd.f32 %v1629, %v2200
    %v2202 = vpop.f32.mrb[0].mxu0
    %v2203 = vpop.f32.mrb[0].mxu0
    %2204 = vdwg.mxu0
    %2205 = vmatprep.subr.bf16.mxu0 %v1929
    %2206 = vmatpush1.bf16.msra.mxu0 %v1928
    %2207 = vmatprep.subr.bf16.mxu0 %v1936
    %2208 = vmatpush1.bf16.msra.mxu0 %v1935
    %2209 = vmatprep.subr.bf16.mxu0 %v1943
    %2210 = vmatpush1.bf16.msra.mxu0 %v1942
    %2211 = vmatprep.subr.bf16.mxu0 %v1950
    %2212 = vmatpush1.bf16.msra.mxu0 %v1949
    %2213 = vmatprep.subr.bf16.mxu0 %v1957
    %2214 = vmatpush1.bf16.msra.mxu0 %v1956
    %2215 = vmatprep.subr.bf16.mxu0 %v1964
    %2216 = vmatpush1.bf16.msra.mxu0 %v1963
    %2217 = vmatprep.subr.bf16.mxu0 %v1971
    %2218 = vmatpush1.bf16.msra.mxu0 %v1970
    %2219 = vmatprep.subr.bf16.mxu0 %v1978
    %2220 = vmatpush1.bf16.msra.mxu0 %v1977
    %2221 = vmatprep.subr.bf16.mxu0 %v1985
    %2222 = vmatpush1.bf16.msra.mxu0 %v1984
    %2223 = vmatprep.subr.bf16.mxu0 %v1992
    %2224 = vmatpush1.bf16.msra.mxu0 %v1991
    %2225 = vmatprep.subr.bf16.mxu0 %v1999
    %2226 = vmatpush1.bf16.msra.mxu0 %v1998
    %2227 = vmatprep.subr.bf16.mxu0 %v2006
    %2228 = vmatpush1.bf16.msra.mxu0 %v2005
    %2229 = vmatprep.subr.bf16.mxu0 %v2118
    %2230 = vmatpush1.bf16.msra.mxu0 %v2115
    %2231 = vmatprep.subr.bf16.mxu0 0
    %2232 = vmatpush1.bf16.msra.mxu0 0
    %2233 = vmatprep.subr.bf16.mxu0 0
    %2234 = vmatpush1.bf16.msra.mxu0 0
    %2235 = vmatprep.subr.bf16.mxu0 0
    %2236 = vmatpush1.bf16.msra.mxu0 0
    %2237 = vmatprep.mubr.bf16.mxu0 %v2100
    %2238 = vmatmul.mubr.bf16.gmra.mrb[0].mxu0 %v1510
    %v2239 = vpop.f32.mrb[0].mxu0
    %v2240 = vadd.f32 %v1633, %v2239
    %v2241 = vpop.f32.mrb[0].mxu0
    %v2242 = vadd.f32 %v1637, %v2241
    %v2243 = vpop.f32.mrb[0].mxu0
    %v2244 = vpop.f32.mrb[0].mxu0
    %2245 = vdwg.mxu0
    %2246 = vmatprep.subr.bf16.mxu0 0
    %2247 = vmatpush1.bf16.msra.mxu0 %v1930
    %2248 = vmatprep.subr.bf16.mxu0 0
    %2249 = vmatpush1.bf16.msra.mxu0 %v1937
    %2250 = vmatprep.subr.bf16.mxu0 0
    %2251 = vmatpush1.bf16.msra.mxu0 %v1944
    %2252 = vmatprep.subr.bf16.mxu0 0
    %2253 = vmatpush1.bf16.msra.mxu0 %v1951
    %2254 = vmatprep.subr.bf16.mxu0 0
    %2255 = vmatpush1.bf16.msra.mxu0 %v1958
    %2256 = vmatprep.subr.bf16.mxu0 0
    %2257 = vmatpush1.bf16.msra.mxu0 %v1965
    %2258 = vmatprep.subr.bf16.mxu0 0
    %2259 = vmatpush1.bf16.msra.mxu0 %v1972
    %2260 = vmatprep.subr.bf16.mxu0 0
    %2261 = vmatpush1.bf16.msra.mxu0 %v1979
    %2262 = vmatprep.subr.bf16.mxu0 0
    %2263 = vmatpush1.bf16.msra.mxu0 %v1986
    %2264 = vmatprep.subr.bf16.mxu0 0
    %2265 = vmatpush1.bf16.msra.mxu0 %v1993
    %2266 = vmatprep.subr.bf16.mxu0 0
    %2267 = vmatpush1.bf16.msra.mxu0 %v2000
    %2268 = vmatprep.subr.bf16.mxu0 0
    %2269 = vmatpush1.bf16.msra.mxu0 %v2007
    %2270 = vmatprep.subr.bf16.mxu0 0
    %2271 = vmatpush1.bf16.msra.mxu0 %v2121
    %2272 = vmatprep.subr.bf16.mxu0 0
    %2273 = vmatpush1.bf16.msra.mxu0 0
    %2274 = vmatprep.subr.bf16.mxu0 0
    %2275 = vmatpush1.bf16.msra.mxu0 0
    %2276 = vmatprep.subr.bf16.mxu0 0
    %2277 = vmatpush1.bf16.msra.mxu0 0
    %2278 = vmatprep.mubr.bf16.mxu0 %v2100
    %2279 = vmatmul.mubr.bf16.gmra.mrb[0].mxu0 %v1510
    %v2280 = vpop.f32.mrb[0].mxu0
    %v2281 = vadd.f32 %v1641, %v2280
    %v2282 = vpop.f32.mrb[0].mxu0
    %v2283 = vpop.f32.mrb[0].mxu0
    %v2284 = vpop.f32.mrb[0].mxu0
    %2285 = vdwg.mxu0
    %v2286 = vmul.f32 %v2158, 0.5
    %v2287 = vmul.f32 %v2160, 0.5
    %v2288 = vmul.f32 %v2199, 0.5
    %v2289 = vmul.f32 %v2201, 0.5
    %v2290 = vmul.f32 %v2240, 0.5
    %v2291 = vmul.f32 %v2242, 0.5
    %v2292 = vmul.f32 %v2281, 0.5
    %v2293 = vtanh.pop %v2286
    %v2294 = vtanh.pop %v2287
    %v2295 = vtanh.pop %v2288
    %v2296 = vtanh.pop %v2289
    %v2297 = vtanh.pop %v2290
    %v2298 = vtanh.pop %v2291
    %v2299 = vtanh.pop %v2292
    %v2300 = vmul.f32 %v2293, 0.5
    %v2301 = vmul.f32 %v2294, 0.5
    %v2302 = vmul.f32 %v2295, 0.5
    %v2303 = vmul.f32 %v2296, 0.5
    %v2304 = vmul.f32 %v2297, 0.5
    %v2305 = vmul.f32 %v2298, 0.5
    %v2306 = vmul.f32 %v2299, 0.5
    %v2307 = vadd.f32 %v2300, 0.5
    %v2308 = vadd.f32 %v2301, 0.5
    %v2309 = vadd.f32 %v2302, 0.5
    %v2310 = vadd.f32 %v2303, 0.5
    %v2311 = vadd.f32 %v2304, 0.5
    %v2312 = vadd.f32 %v2305, 0.5
    %v2313 = vadd.f32 %v2306, 0.5
    %v2314 = vpack.c.bf16 %v2307, %v2307
    %v2315 = vpack.c.bf16 %v2308, %v2308
    %v2316 = vpack.c.bf16 %v2309, %v2309
    %v2317 = vpack.c.bf16 %v2310, %v2310
    %v2318 = vpack.c.bf16 %v2311, %v2311
    %v2319 = vpack.c.bf16 %v2312, %v2312
    %v2320 = vpack.c.bf16 %v2313, %v2313
    %v2328 = vunpack.c.l.b16 %v2314
    %v2329 = vunpack.c.l.b16 %v2315
    %v2330 = vunpack.c.l.b16 %v2316
    %v2331 = vunpack.c.l.b16 %v2317
    %v2332 = vunpack.c.l.b16 %v2318
    %v2333 = vunpack.c.l.b16 %v2319
    %v2334 = vunpack.c.l.b16 %v2320
    %v2335 = vpack.c.b16 %v2329, %v2328
    %v2336 = vpack.c.b16 %v2331, %v2330
    %v2337 = vpack.c.b16 %v2333, %v2332
    %v2338 = vpack.c.b16 %v2334, %v2334
    %2343 = vst [vmem:[#allocation2] sm:$0xff] %v2335
    %2344 = vst [vmem:[#allocation2 + $0x8] sm:$0xff] %v2336
    %2345 = vst [vmem:[#allocation2 + $0x10] sm:$0xff] %v2337
    %vm2346 = vcmask 125952
    %2347 = vst.msk [vmem:[#allocation2 + $0x18] sm:$0xf] %vm2346, %v2338
    %vm2348 = vcmask 31744
    %2349 = vst.msk [vmem:[%s15] sm:$0xff] %vm2348, %v1217
    // Predicated region
    $region58: #{tpu_custom_call.1} parent=1 // pred_check
      _
    $region59: #{tpu_custom_call.1} parent=1 // pred_check_branch
      %2351 = sbr.rel (0) target = $region61
    $region60: #{tpu_custom_call.1} parent=1 // pred_region
      %s2353 = ssub.s32 448, 448
      %2354 = vsyncadd [#allocation3], %s2353
      %s2356 = sshll.u32 [#allocation2], 4
      %s2357 = int_to_ptr.vmem [resolvable:$true] %s2356
      %2359 = dma.vmem_to_hbm [thread:$0]  %s2357, 448, %s14, [#allocation3]
    $region61: #{tpu_custom_call.1} parent=1 // pred_fallthru
      _
    // Predicated region
    $region62: #{tpu_custom_call.1} parent=1 // pred_check
      _
    $region63: #{tpu_custom_call.1} parent=1 // pred_check_branch
      %2361 = sbr.rel (0) target = $region65
    $region64: #{tpu_custom_call.1} parent=1 // pred_region
      _
    $region65: #{tpu_custom_call.1} parent=1 // pred_fallthru
      _
    // Predicated region
    $region66: #{tpu_custom_call.1} parent=1 // pred_check
      _
    $region67: #{tpu_custom_call.1} parent=1 // pred_check_branch
      %2363 = sbr.rel (0) target = $region69
    $region68: #{tpu_custom_call.1} parent=1 // pred_region
      %2364 = dma.done [#allocation3], 448
    $region69: #{tpu_custom_call.1} parent=1 // pred_fallthru
      _
    // Predicated region
    $region70: #{tpu_custom_call.1} parent=1 // pred_check
      _
    $region71: #{tpu_custom_call.1} parent=1 // pred_check_branch
      %2366 = sbr.rel (0) target = $region73
    $region72: #{tpu_custom_call.1} parent=1 // pred_region
      _
    $region73: #{tpu_custom_call.1} parent=1 // pred_fallthru
      _
    %2367 = vsyncpa [#allocation3], 1

</llo_original>
